<compile_context>
chip_gen: v6e
topology: v6e:2x2x1
jax: 0.10.0
libtpu: 0.0.40
codegen_flags: <defaults>
</compile_context>

<pallas_src>
import numpy as np

import jax
import jax.numpy as jnp
from jax.experimental import pallas as pl
from jax.experimental.pallas import tpu as pltpu


# ------------------------------ fused kernel -------------------------------

def _fused_net_kernel(cols1_ref, wb1_ref, b1_ref, wb2_ref, b2_ref,
                      w1fc_ref, b1fc_ref, w2fc_ref, b2fc_ref,
                      w3fc_ref, b3fc_ref, o_ref):
    """One grid step = one image.  Layouts: conv activations are (rows=h,
    lanes=w*channels); conv weights are banded so each conv is ONE GEMM."""
    f32 = jnp.float32
    bf16 = jnp.bfloat16

    def max3(a, b, c):
        return jnp.maximum(jnp.maximum(a, b), c)

    # ---- conv1 + bias + ReLU: one GEMM, K=180 (3 ky-taps x 20 padded-w x 3 cin)
    cols1 = cols1_ref[0]                                            # (18, 180) bf16
    a1 = jnp.dot(cols1, wb1_ref[...], preferred_element_type=f32)   # (18, 144)
    a1 = jnp.maximum(a1 + b1_ref[...], 0.0)                         # lanes = wo*8 + oc

    # ---- maxpool1 (3x3 stride 3): 18x18x8 -> 6x6x8 --------------------------
    a1w = jnp.concatenate(                                          # pool over w (lanes)
        [max3(a1[:, 24 * wp:24 * wp + 8],
              a1[:, 24 * wp + 8:24 * wp + 16],
              a1[:, 24 * wp + 16:24 * wp + 24]) for wp in range(6)],
        axis=1)                                                     # (18, 48)
    p1 = jnp.concatenate(                                           # pool over h (rows)
        [max3(a1w[3 * hp:3 * hp + 1, :],
              a1w[3 * hp + 1:3 * hp + 2, :],
              a1w[3 * hp + 2:3 * hp + 3, :]) for hp in range(6)],
        axis=0)                                                     # (6, 48)

    # ---- zero-pad pooled map to the 8x8 conv2 input grid --------------------
    zl = jnp.zeros((6, 8), f32)
    zr = jnp.zeros((1, 64), f32)
    p1pad = jnp.concatenate(
        [zr, jnp.concatenate([zl, p1, zl], axis=1), zr], axis=0)    # (8, 64)

    # ---- conv2 + bias + ReLU: 3 row-shifted taps fused along K -> one GEMM ---
    g = jnp.concatenate([p1pad[ky:ky + 6, :] for ky in range(3)], axis=1)  # (6, 192)
    a2 = jnp.dot(g.astype(bf16), wb2_ref[...], preferred_element_type=f32)  # (6, 96)
    a2 = jnp.maximum(a2 + b2_ref[...], 0.0)                         # lanes = wo2*16 + oc

    # ---- maxpool2 (3x3 stride 3): 6x6x16 -> 2x2x16 ---------------------------
    a2w = jnp.concatenate(
        [max3(a2[:, 48 * wq:48 * wq + 16],
              a2[:, 48 * wq + 16:48 * wq + 32],
              a2[:, 48 * wq + 32:48 * wq + 48]) for wq in range(2)],
        axis=1)                                                     # (6, 32)
    p2 = jnp.concatenate(
        [max3(a2w[3 * hq:3 * hq + 1, :],
              a2w[3 * hq + 1:3 * hq + 2, :],
              a2w[3 * hq + 2:3 * hq + 3, :]) for hq in range(2)],
        axis=0)                                                     # (2, 32)

    # ---- flatten: (hq, wq, oc) onto lanes; NCHW order folded into fc1 weight --
    xfc = jnp.concatenate([p2[0:1, :], p2[1:2, :]], axis=1)         # (1, 64)

    # TODO(synk): Dropout(p=0.25) is an identity at inference; training-mode
    # stochastic masking (pltpu.prng_*) is not implemented.

    # ---- fc1 -> fc2 -> fc3 (bf16 MXU operands, f32 accumulate/elementwise) ---
    h = jnp.dot(xfc.astype(bf16), w1fc_ref[...], preferred_element_type=f32)
    h = jnp.maximum(h + b1fc_ref[...], 0.0)                         # (1, 120)
    h = jnp.dot(h.astype(bf16), w2fc_ref[...], preferred_element_type=f32)
    h = jnp.maximum(h + b2fc_ref[...], 0.0)                         # (1, 84)
    y = (jnp.dot(h.astype(bf16), w3fc_ref[...], preferred_element_type=f32)
         + b3fc_ref[...])                                           # (1, 1)
    o_ref[0] = y.astype(o_ref.dtype)


# ------------------------------ host-side prep -----------------------------

def pack_params(params):
    """One-time, batch-independent repack of PyTorch-shaped weights into the
    banded / permuted layouts used by the fused kernel (bf16 MXU operands,
    f32 biases)."""
    conv1_w = np.asarray(params["conv1_w"], np.float32)   # (8, 3, 3, 3)  (oc,cin,ky,kx)
    conv2_w = np.asarray(params["conv2_w"], np.float32)   # (16, 8, 3, 3)
    fc1_w = np.asarray(params["fc1_w"], np.float32)       # (120, 64)

    # conv1 banded weight: rows = ky*60 + w_in*3 + cin (w_in = padded width 0..19),
    # cols = wo*8 + oc.  Encodes all nine 3x3 taps -> conv1 is ONE GEMM, K=180.
    wb1 = np.zeros((180, 144), np.float32)
    for ky in range(3):
        for kx in range(3):
            blk = conv1_w[:, :, ky, kx].T                  # (cin=3, oc=8)
            for wo in range(18):
                w_in = wo + kx
                wb1[ky * 60 + w_in * 3: ky * 60 + w_in * 3 + 3,
                    wo * 8: wo * 8 + 8] = blk

    # conv2 banded weight: rows = ky*64 + w_pad*8 + cin (w_pad = padded width 0..7),
    # cols = wo2*16 + oc.  K=192.
    wb2 = np.zeros((192, 96), np.float32)
    for ky in range(3):
        for kx in range(3):
            blk = conv2_w[:, :, ky, kx].T                  # (cin=8, oc=16)
            for wo in range(6):
                w_in = wo + kx
                wb2[ky * 64 + w_in * 8: ky * 64 + w_in * 8 + 8,
                    wo * 16: wo * 16 + 16] = blk

    # fc1 with the PyTorch NCHW flatten (index = oc*4 + hq*2 + wq) folded into a
    # row permutation of the kernel's (hq, wq, oc) lane order.
    w1fc = np.zeros((64, 120), np.float32)
    for oc in range(16):
        for hq in range(2):
            for wq in range(2):
                w1fc[hq * 32 + wq * 16 + oc, :] = fc1_w[:, oc * 4 + hq * 2 + wq]

    b1 = np.tile(np.asarray(params["conv1_b"], np.float32), 18).reshape(1, 144)
    b2 = np.tile(np.asarray(params["conv2_b"], np.float32), 6).reshape(1, 96)

    bf16 = jnp.bfloat16
    return {
        "wb1": jnp.asarray(wb1, bf16), "b1": jnp.asarray(b1),
        "wb2": jnp.asarray(wb2, bf16), "b2": jnp.asarray(b2),
        "w1fc": jnp.asarray(w1fc, bf16),
        "b1fc": jnp.asarray(np.asarray(params["fc1_b"], np.float32).reshape(1, 120)),
        "w2fc": jnp.asarray(np.asarray(params["fc2_w"], np.float32).T, bf16),
        "b2fc": jnp.asarray(np.asarray(params["fc2_b"], np.float32).reshape(1, 84)),
        "w3fc": jnp.asarray(np.asarray(params["fc3_w"], np.float32).T, bf16),
        "b3fc": jnp.asarray(np.asarray(params["fc3_b"], np.float32).reshape(1, 1)),
    }


@jax.jit
def net_forward(x_nchw, packed):
    n = x_nchw.shape[0]

    # Tiny XLA glue: NCHW -> padded NHWC, then the 3 vertical (ky) taps are
    # concatenated on the lane axis so conv1 becomes one lane-dense GEMM whose
    # rows are the 18 output rows and whose lanes are (ky, padded w, cin).
    x = jnp.transpose(x_nchw, (0, 2, 3, 1)).astype(jnp.float32)      # (N, 18, 18, 3)
    xp = jnp.pad(x, ((0, 0), (1, 1), (1, 1), (0, 0)))                # (N, 20, 20, 3)
    taps = [xp[:, ky:ky + 18, :, :].reshape(n, 18, 60) for ky in range(3)]
    cols1 = jnp.concatenate(taps, axis=-1).astype(jnp.bfloat16)      # (N, 18, 180)

    img = lambda b: (b, 0, 0)
    cst = lambda b: (0, 0)
    in_specs = [
        pl.BlockSpec((1, 18, 180), img),    # cols1 (one image per grid step)
        pl.BlockSpec((180, 144), cst),      # wb1
        pl.BlockSpec((1, 144), cst),        # b1
        pl.BlockSpec((192, 96), cst),       # wb2
        pl.BlockSpec((1, 96), cst),         # b2
        pl.BlockSpec((64, 120), cst),       # w1fc
        pl.BlockSpec((1, 120), cst),        # b1fc
        pl.BlockSpec((120, 84), cst),       # w2fc
        pl.BlockSpec((1, 84), cst),         # b2fc
        pl.BlockSpec((84, 1), cst),         # w3fc
        pl.BlockSpec((1, 1), cst),          # b3fc
    ]
    out = pl.pallas_call(
        _fused_net_kernel,
        out_shape=jax.ShapeDtypeStruct((n, 1, 1), jnp.float32),
        grid=(n,),
        in_specs=in_specs,
        out_specs=pl.BlockSpec((1, 1, 1), img),
        compiler_params=pltpu.CompilerParams(dimension_semantics=("parallel",)),
    )(cols1, packed["wb1"], packed["b1"], packed["wb2"], packed["b2"],
      packed["w1fc"], packed["b1fc"], packed["w2fc"], packed["b2fc"],
      packed["w3fc"], packed["b3fc"])
    return out.reshape(n, 1)


# ------------------------- reference + parameters --------------------------

def init_params(key, channels_num=3, y_size=18, x_size=18):
    """Deterministic synthetic parameters in PyTorch-convention shapes."""
    ks = jax.random.split(key, 10)

    def normal(k, shape, scale=0.1):
        return scale * jax.random.normal(k, shape, dtype=jnp.float32)

    ys, xs = y_size, x_size
    for ksz in (3, 3):                      # same arithmetic as the torch __init__
        ys //= ksz
        xs //= ksz
    in_feat = 16 * ys * xs                  # 64

    return {
        "conv1_w": normal(ks[0], (8, channels_num, 3, 3)),
        "conv1_b": normal(ks[1], (8,)),
        "conv2_w": normal(ks[2], (16, 8, 3, 3)),
        "conv2_b": normal(ks[3], (16,)),
        "fc1_w": normal(ks[4], (120, in_feat)),
        "fc1_b": normal(ks[5], (120,)),
        "fc2_w": normal(ks[6], (84, 120)),
        "fc2_b": normal(ks[7], (84,)),
        "fc3_w": normal(ks[8], (1, 84)),
        "fc3_b": normal(ks[9], (1,)),
    }


def net_forward_reference(x_nchw, params):
    """Plain-JAX reference of the PyTorch module (dropout = identity)."""
    def conv_block(x, w, b):
        y = jax.lax.conv_general_dilated(
            x, w, window_strides=(1, 1), padding=((1, 1), (1, 1)),
            dimension_numbers=("NCHW", "OIHW", "NCHW"))
        y = jax.nn.relu(y + b[None, :, None, None])
        return jax.lax.reduce_window(y, -jnp.inf, jax.lax.max,
                                     (1, 1, 3, 3), (1, 1, 3, 3), "VALID")

    x = x_nchw.astype(jnp.float32)
    x = conv_block(x, params["conv1_w"], params["conv1_b"])
    x = conv_block(x, params["conv2_w"], params["conv2_b"])
    f = x.reshape(x.shape[0], -1)
    h = jax.nn.relu(f @ params["fc1_w"].T + params["fc1_b"])
    h = jax.nn.relu(h @ params["fc2_w"].T + params["fc2_b"])
    return h @ params["fc3_w"].T + params["fc3_b"]


# ---------------------------------- main ------------------------------------

if __name__ == "__main__":
    key = jax.random.PRNGKey(0)
    k_x, k_p = jax.random.split(key)
    # PyTorch NCHW convention: batch=2, channels=3, 18x18 spatial.
    x = jax.random.normal(k_x, (2, 3, 18, 18), dtype=jnp.float32)
    params = init_params(k_p, channels_num=3, y_size=18, x_size=18)
    packed = pack_params(params)

    out = jax.block_until_ready(net_forward(x, packed))
    ref = jax.block_until_ready(net_forward_reference(x, params))

    assert out.shape == (2, 1) and out.dtype == jnp.float32
    np.testing.assert_allclose(np.asarray(out), np.asarray(ref), rtol=2e-2, atol=2e-2)
    print("KERNEL_OK")
</pallas_src>

<mosaic_0001>
module attributes {stable_mosaic.version = 11 : i64} {
  func.func @_fused_net_kernel(%arg0: i32, %arg1: memref<1x18x180xbf16, #tpu.memory_space<vmem>>, %arg2: memref<180x144xbf16, #tpu.memory_space<vmem>>, %arg3: memref<1x144xf32, #tpu.memory_space<vmem>>, %arg4: memref<192x96xbf16, #tpu.memory_space<vmem>>, %arg5: memref<1x96xf32, #tpu.memory_space<vmem>>, %arg6: memref<64x120xbf16, #tpu.memory_space<vmem>>, %arg7: memref<1x120xf32, #tpu.memory_space<vmem>>, %arg8: memref<120x84xbf16, #tpu.memory_space<vmem>>, %arg9: memref<1x84xf32, #tpu.memory_space<vmem>>, %arg10: memref<84x1xbf16, #tpu.memory_space<vmem>>, %arg11: memref<1x1xf32, #tpu.memory_space<vmem>>, %arg12: memref<1x1x1xf32, #tpu.memory_space<vmem>>) attributes {dimension_semantics = [#tpu.dimension_semantics<parallel>], iteration_bounds = array<i64: 2>, scalar_prefetch = 0 : i64, scratch_operands = 0 : i64, tpu.core_type = #tpu.core_type<tc>, window_params = [{transform_indices = @transform_0, window_bounds = array<i64: 1, 18, 180>}, {pipeline_mode = #tpu.pipeline_mode<synchronous>, transform_indices = @transform_1, window_bounds = array<i64: 180, 144>}, {pipeline_mode = #tpu.pipeline_mode<synchronous>, transform_indices = @transform_2, window_bounds = array<i64: 1, 144>}, {pipeline_mode = #tpu.pipeline_mode<synchronous>, transform_indices = @transform_3, window_bounds = array<i64: 192, 96>}, {pipeline_mode = #tpu.pipeline_mode<synchronous>, transform_indices = @transform_4, window_bounds = array<i64: 1, 96>}, {pipeline_mode = #tpu.pipeline_mode<synchronous>, transform_indices = @transform_5, window_bounds = array<i64: 64, 120>}, {pipeline_mode = #tpu.pipeline_mode<synchronous>, transform_indices = @transform_6, window_bounds = array<i64: 1, 120>}, {pipeline_mode = #tpu.pipeline_mode<synchronous>, transform_indices = @transform_7, window_bounds = array<i64: 120, 84>}, {pipeline_mode = #tpu.pipeline_mode<synchronous>, transform_indices = @transform_8, window_bounds = array<i64: 1, 84>}, {pipeline_mode = #tpu.pipeline_mode<synchronous>, transform_indices = @transform_9, window_bounds = array<i64: 84, 1>}, {pipeline_mode = #tpu.pipeline_mode<synchronous>, transform_indices = @transform_10, window_bounds = array<i64: 1, 1>}, {transform_indices = @transform_11, window_bounds = array<i64: 1, 1, 1>}]} {
    %c0 = arith.constant 0 : index
    %c0_0 = arith.constant 0 : index
    %c0_1 = arith.constant 0 : index
    %0 = vector.load %arg1[%c0, %c0_0, %c0_1] : memref<1x18x180xbf16, #tpu.memory_space<vmem>>, vector<1x18x180xbf16>
    %1 = vector.shape_cast %0 : vector<1x18x180xbf16> to vector<18x180xbf16>
    %c0_2 = arith.constant 0 : index
    %c0_3 = arith.constant 0 : index
    %2 = vector.load %arg2[%c0_2, %c0_3] : memref<180x144xbf16, #tpu.memory_space<vmem>>, vector<180x144xbf16>
    %cst = arith.constant dense<0.000000e+00> : vector<18x144xf32>
    %3 = tpu.matmul %1, %2, %cst {dimension_numbers = #tpu.dot_dimension_numbers<[1], [0], [0], [1], [0, 0, 1, 1], [], []>} : vector<18x180xbf16>, vector<180x144xbf16>, vector<18x144xf32> -> vector<18x144xf32>
    %c0_4 = arith.constant 0 : index
    %c0_5 = arith.constant 0 : index
    %4 = vector.load %arg3[%c0_4, %c0_5] : memref<1x144xf32, #tpu.memory_space<vmem>>, vector<1x144xf32>
    %5 = vector.broadcast %4 : vector<1x144xf32> to vector<18x144xf32>
    %6 = arith.addf %3, %5 : vector<18x144xf32>
    %cst_6 = arith.constant 0.000000e+00 : f32
    %7 = vector.broadcast %cst_6 : f32 to vector<18x144xf32>
    %8 = arith.maximumf %6, %7 : vector<18x144xf32>
    %9 = vector.extract_strided_slice %8 {offsets = [0, 0], sizes = [18, 8], strides = [1, 1]} : vector<18x144xf32> to vector<18x8xf32>
    %10 = vector.extract_strided_slice %8 {offsets = [0, 8], sizes = [18, 8], strides = [1, 1]} : vector<18x144xf32> to vector<18x8xf32>
    %11 = vector.extract_strided_slice %8 {offsets = [0, 16], sizes = [18, 8], strides = [1, 1]} : vector<18x144xf32> to vector<18x8xf32>
    %12 = arith.maximumf %9, %10 : vector<18x8xf32>
    %13 = arith.maximumf %12, %11 : vector<18x8xf32>
    %14 = vector.extract_strided_slice %8 {offsets = [0, 24], sizes = [18, 8], strides = [1, 1]} : vector<18x144xf32> to vector<18x8xf32>
    %15 = vector.extract_strided_slice %8 {offsets = [0, 32], sizes = [18, 8], strides = [1, 1]} : vector<18x144xf32> to vector<18x8xf32>
    %16 = vector.extract_strided_slice %8 {offsets = [0, 40], sizes = [18, 8], strides = [1, 1]} : vector<18x144xf32> to vector<18x8xf32>
    %17 = arith.maximumf %14, %15 : vector<18x8xf32>
    %18 = arith.maximumf %17, %16 : vector<18x8xf32>
    %19 = vector.extract_strided_slice %8 {offsets = [0, 48], sizes = [18, 8], strides = [1, 1]} : vector<18x144xf32> to vector<18x8xf32>
    %20 = vector.extract_strided_slice %8 {offsets = [0, 56], sizes = [18, 8], strides = [1, 1]} : vector<18x144xf32> to vector<18x8xf32>
    %21 = vector.extract_strided_slice %8 {offsets = [0, 64], sizes = [18, 8], strides = [1, 1]} : vector<18x144xf32> to vector<18x8xf32>
    %22 = arith.maximumf %19, %20 : vector<18x8xf32>
    %23 = arith.maximumf %22, %21 : vector<18x8xf32>
    %24 = vector.extract_strided_slice %8 {offsets = [0, 72], sizes = [18, 8], strides = [1, 1]} : vector<18x144xf32> to vector<18x8xf32>
    %25 = vector.extract_strided_slice %8 {offsets = [0, 80], sizes = [18, 8], strides = [1, 1]} : vector<18x144xf32> to vector<18x8xf32>
    %26 = vector.extract_strided_slice %8 {offsets = [0, 88], sizes = [18, 8], strides = [1, 1]} : vector<18x144xf32> to vector<18x8xf32>
    %27 = arith.maximumf %24, %25 : vector<18x8xf32>
    %28 = arith.maximumf %27, %26 : vector<18x8xf32>
    %29 = vector.extract_strided_slice %8 {offsets = [0, 96], sizes = [18, 8], strides = [1, 1]} : vector<18x144xf32> to vector<18x8xf32>
    %30 = vector.extract_strided_slice %8 {offsets = [0, 104], sizes = [18, 8], strides = [1, 1]} : vector<18x144xf32> to vector<18x8xf32>
    %31 = vector.extract_strided_slice %8 {offsets = [0, 112], sizes = [18, 8], strides = [1, 1]} : vector<18x144xf32> to vector<18x8xf32>
    %32 = arith.maximumf %29, %30 : vector<18x8xf32>
    %33 = arith.maximumf %32, %31 : vector<18x8xf32>
    %34 = vector.extract_strided_slice %8 {offsets = [0, 120], sizes = [18, 8], strides = [1, 1]} : vector<18x144xf32> to vector<18x8xf32>
    %35 = vector.extract_strided_slice %8 {offsets = [0, 128], sizes = [18, 8], strides = [1, 1]} : vector<18x144xf32> to vector<18x8xf32>
    %36 = vector.extract_strided_slice %8 {offsets = [0, 136], sizes = [18, 8], strides = [1, 1]} : vector<18x144xf32> to vector<18x8xf32>
    %37 = arith.maximumf %34, %35 : vector<18x8xf32>
    %38 = arith.maximumf %37, %36 : vector<18x8xf32>
    %39 = tpu.concatenate %13, %18, %23, %28, %33, %38 in 1 : vector<18x8xf32>, vector<18x8xf32>, vector<18x8xf32>, vector<18x8xf32>, vector<18x8xf32>, vector<18x8xf32> -> vector<18x48xf32>
    %40 = vector.extract_strided_slice %39 {offsets = [0, 0], sizes = [1, 48], strides = [1, 1]} : vector<18x48xf32> to vector<1x48xf32>
    %41 = vector.extract_strided_slice %39 {offsets = [1, 0], sizes = [1, 48], strides = [1, 1]} : vector<18x48xf32> to vector<1x48xf32>
    %42 = vector.extract_strided_slice %39 {offsets = [2, 0], sizes = [1, 48], strides = [1, 1]} : vector<18x48xf32> to vector<1x48xf32>
    %43 = arith.maximumf %40, %41 : vector<1x48xf32>
    %44 = arith.maximumf %43, %42 : vector<1x48xf32>
    %45 = vector.extract_strided_slice %39 {offsets = [3, 0], sizes = [1, 48], strides = [1, 1]} : vector<18x48xf32> to vector<1x48xf32>
    %46 = vector.extract_strided_slice %39 {offsets = [4, 0], sizes = [1, 48], strides = [1, 1]} : vector<18x48xf32> to vector<1x48xf32>
    %47 = vector.extract_strided_slice %39 {offsets = [5, 0], sizes = [1, 48], strides = [1, 1]} : vector<18x48xf32> to vector<1x48xf32>
    %48 = arith.maximumf %45, %46 : vector<1x48xf32>
    %49 = arith.maximumf %48, %47 : vector<1x48xf32>
    %50 = vector.extract_strided_slice %39 {offsets = [6, 0], sizes = [1, 48], strides = [1, 1]} : vector<18x48xf32> to vector<1x48xf32>
    %51 = vector.extract_strided_slice %39 {offsets = [7, 0], sizes = [1, 48], strides = [1, 1]} : vector<18x48xf32> to vector<1x48xf32>
    %52 = vector.extract_strided_slice %39 {offsets = [8, 0], sizes = [1, 48], strides = [1, 1]} : vector<18x48xf32> to vector<1x48xf32>
    %53 = arith.maximumf %50, %51 : vector<1x48xf32>
    %54 = arith.maximumf %53, %52 : vector<1x48xf32>
    %55 = vector.extract_strided_slice %39 {offsets = [9, 0], sizes = [1, 48], strides = [1, 1]} : vector<18x48xf32> to vector<1x48xf32>
    %56 = vector.extract_strided_slice %39 {offsets = [10, 0], sizes = [1, 48], strides = [1, 1]} : vector<18x48xf32> to vector<1x48xf32>
    %57 = vector.extract_strided_slice %39 {offsets = [11, 0], sizes = [1, 48], strides = [1, 1]} : vector<18x48xf32> to vector<1x48xf32>
    %58 = arith.maximumf %55, %56 : vector<1x48xf32>
    %59 = arith.maximumf %58, %57 : vector<1x48xf32>
    %60 = vector.extract_strided_slice %39 {offsets = [12, 0], sizes = [1, 48], strides = [1, 1]} : vector<18x48xf32> to vector<1x48xf32>
    %61 = vector.extract_strided_slice %39 {offsets = [13, 0], sizes = [1, 48], strides = [1, 1]} : vector<18x48xf32> to vector<1x48xf32>
    %62 = vector.extract_strided_slice %39 {offsets = [14, 0], sizes = [1, 48], strides = [1, 1]} : vector<18x48xf32> to vector<1x48xf32>
    %63 = arith.maximumf %60, %61 : vector<1x48xf32>
    %64 = arith.maximumf %63, %62 : vector<1x48xf32>
    %65 = vector.extract_strided_slice %39 {offsets = [15, 0], sizes = [1, 48], strides = [1, 1]} : vector<18x48xf32> to vector<1x48xf32>
    %66 = vector.extract_strided_slice %39 {offsets = [16, 0], sizes = [1, 48], strides = [1, 1]} : vector<18x48xf32> to vector<1x48xf32>
    %67 = vector.extract_strided_slice %39 {offsets = [17, 0], sizes = [1, 48], strides = [1, 1]} : vector<18x48xf32> to vector<1x48xf32>
    %68 = arith.maximumf %65, %66 : vector<1x48xf32>
    %69 = arith.maximumf %68, %67 : vector<1x48xf32>
    %70 = tpu.concatenate %44, %49, %54, %59, %64, %69 in 0 : vector<1x48xf32>, vector<1x48xf32>, vector<1x48xf32>, vector<1x48xf32>, vector<1x48xf32>, vector<1x48xf32> -> vector<6x48xf32>
    %cst_7 = arith.constant 0.000000e+00 : f32
    %71 = vector.broadcast %cst_7 : f32 to vector<6x8xf32>
    %cst_8 = arith.constant 0.000000e+00 : f32
    %72 = vector.broadcast %cst_8 : f32 to vector<1x64xf32>
    %73 = tpu.concatenate %71, %70, %71 in 1 : vector<6x8xf32>, vector<6x48xf32>, vector<6x8xf32> -> vector<6x64xf32>
    %74 = tpu.concatenate %72, %73, %72 in 0 : vector<1x64xf32>, vector<6x64xf32>, vector<1x64xf32> -> vector<8x64xf32>
    %75 = vector.extract_strided_slice %74 {offsets = [0, 0], sizes = [6, 64], strides = [1, 1]} : vector<8x64xf32> to vector<6x64xf32>
    %76 = vector.extract_strided_slice %74 {offsets = [1, 0], sizes = [6, 64], strides = [1, 1]} : vector<8x64xf32> to vector<6x64xf32>
    %77 = vector.extract_strided_slice %74 {offsets = [2, 0], sizes = [6, 64], strides = [1, 1]} : vector<8x64xf32> to vector<6x64xf32>
    %78 = tpu.concatenate %75, %76, %77 in 1 : vector<6x64xf32>, vector<6x64xf32>, vector<6x64xf32> -> vector<6x192xf32>
    %79 = arith.truncf %78 : vector<6x192xf32> to vector<6x192xbf16>
    %c0_9 = arith.constant 0 : index
    %c0_10 = arith.constant 0 : index
    %80 = vector.load %arg4[%c0_9, %c0_10] : memref<192x96xbf16, #tpu.memory_space<vmem>>, vector<192x96xbf16>
    %cst_11 = arith.constant dense<0.000000e+00> : vector<6x96xf32>
    %81 = tpu.matmul %79, %80, %cst_11 {dimension_numbers = #tpu.dot_dimension_numbers<[1], [0], [0], [1], [0, 0, 1, 1], [], []>} : vector<6x192xbf16>, vector<192x96xbf16>, vector<6x96xf32> -> vector<6x96xf32>
    %c0_12 = arith.constant 0 : index
    %c0_13 = arith.constant 0 : index
    %82 = vector.load %arg5[%c0_12, %c0_13] : memref<1x96xf32, #tpu.memory_space<vmem>>, vector<1x96xf32>
    %83 = vector.broadcast %82 : vector<1x96xf32> to vector<6x96xf32>
    %84 = arith.addf %81, %83 : vector<6x96xf32>
    %cst_14 = arith.constant 0.000000e+00 : f32
    %85 = vector.broadcast %cst_14 : f32 to vector<6x96xf32>
    %86 = arith.maximumf %84, %85 : vector<6x96xf32>
    %87 = vector.extract_strided_slice %86 {offsets = [0, 0], sizes = [6, 16], strides = [1, 1]} : vector<6x96xf32> to vector<6x16xf32>
    %88 = vector.extract_strided_slice %86 {offsets = [0, 16], sizes = [6, 16], strides = [1, 1]} : vector<6x96xf32> to vector<6x16xf32>
    %89 = vector.extract_strided_slice %86 {offsets = [0, 32], sizes = [6, 16], strides = [1, 1]} : vector<6x96xf32> to vector<6x16xf32>
    %90 = arith.maximumf %87, %88 : vector<6x16xf32>
    %91 = arith.maximumf %90, %89 : vector<6x16xf32>
    %92 = vector.extract_strided_slice %86 {offsets = [0, 48], sizes = [6, 16], strides = [1, 1]} : vector<6x96xf32> to vector<6x16xf32>
    %93 = vector.extract_strided_slice %86 {offsets = [0, 64], sizes = [6, 16], strides = [1, 1]} : vector<6x96xf32> to vector<6x16xf32>
    %94 = vector.extract_strided_slice %86 {offsets = [0, 80], sizes = [6, 16], strides = [1, 1]} : vector<6x96xf32> to vector<6x16xf32>
    %95 = arith.maximumf %92, %93 : vector<6x16xf32>
    %96 = arith.maximumf %95, %94 : vector<6x16xf32>
    %97 = tpu.concatenate %91, %96 in 1 : vector<6x16xf32>, vector<6x16xf32> -> vector<6x32xf32>
    %98 = vector.extract_strided_slice %97 {offsets = [0, 0], sizes = [1, 32], strides = [1, 1]} : vector<6x32xf32> to vector<1x32xf32>
    %99 = vector.extract_strided_slice %97 {offsets = [1, 0], sizes = [1, 32], strides = [1, 1]} : vector<6x32xf32> to vector<1x32xf32>
    %100 = vector.extract_strided_slice %97 {offsets = [2, 0], sizes = [1, 32], strides = [1, 1]} : vector<6x32xf32> to vector<1x32xf32>
    %101 = arith.maximumf %98, %99 : vector<1x32xf32>
    %102 = arith.maximumf %101, %100 : vector<1x32xf32>
    %103 = vector.extract_strided_slice %97 {offsets = [3, 0], sizes = [1, 32], strides = [1, 1]} : vector<6x32xf32> to vector<1x32xf32>
    %104 = vector.extract_strided_slice %97 {offsets = [4, 0], sizes = [1, 32], strides = [1, 1]} : vector<6x32xf32> to vector<1x32xf32>
    %105 = vector.extract_strided_slice %97 {offsets = [5, 0], sizes = [1, 32], strides = [1, 1]} : vector<6x32xf32> to vector<1x32xf32>
    %106 = arith.maximumf %103, %104 : vector<1x32xf32>
    %107 = arith.maximumf %106, %105 : vector<1x32xf32>
    %108 = tpu.concatenate %102, %107 in 0 : vector<1x32xf32>, vector<1x32xf32> -> vector<2x32xf32>
    %109 = vector.extract_strided_slice %108 {offsets = [0, 0], sizes = [1, 32], strides = [1, 1]} : vector<2x32xf32> to vector<1x32xf32>
    %110 = vector.extract_strided_slice %108 {offsets = [1, 0], sizes = [1, 32], strides = [1, 1]} : vector<2x32xf32> to vector<1x32xf32>
    %111 = tpu.concatenate %109, %110 in 1 : vector<1x32xf32>, vector<1x32xf32> -> vector<1x64xf32>
    %112 = arith.truncf %111 : vector<1x64xf32> to vector<1x64xbf16>
    %c0_15 = arith.constant 0 : index
    %c0_16 = arith.constant 0 : index
    %113 = vector.load %arg6[%c0_15, %c0_16] : memref<64x120xbf16, #tpu.memory_space<vmem>>, vector<64x120xbf16>
    %cst_17 = arith.constant dense<0.000000e+00> : vector<1x120xf32>
    %114 = tpu.matmul %112, %113, %cst_17 {dimension_numbers = #tpu.dot_dimension_numbers<[1], [0], [0], [1], [0, 0, 1, 1], [], []>} : vector<1x64xbf16>, vector<64x120xbf16>, vector<1x120xf32> -> vector<1x120xf32>
    %c0_18 = arith.constant 0 : index
    %c0_19 = arith.constant 0 : index
    %115 = vector.load %arg7[%c0_18, %c0_19] : memref<1x120xf32, #tpu.memory_space<vmem>>, vector<1x120xf32>
    %116 = arith.addf %114, %115 : vector<1x120xf32>
    %cst_20 = arith.constant 0.000000e+00 : f32
    %117 = vector.broadcast %cst_20 : f32 to vector<1x120xf32>
    %118 = arith.maximumf %116, %117 : vector<1x120xf32>
    %119 = arith.truncf %118 : vector<1x120xf32> to vector<1x120xbf16>
    %c0_21 = arith.constant 0 : index
    %c0_22 = arith.constant 0 : index
    %120 = vector.load %arg8[%c0_21, %c0_22] : memref<120x84xbf16, #tpu.memory_space<vmem>>, vector<120x84xbf16>
    %cst_23 = arith.constant dense<0.000000e+00> : vector<1x84xf32>
    %121 = tpu.matmul %119, %120, %cst_23 {dimension_numbers = #tpu.dot_dimension_numbers<[1], [0], [0], [1], [0, 0, 1, 1], [], []>} : vector<1x120xbf16>, vector<120x84xbf16>, vector<1x84xf32> -> vector<1x84xf32>
    %c0_24 = arith.constant 0 : index
    %c0_25 = arith.constant 0 : index
    %122 = vector.load %arg9[%c0_24, %c0_25] : memref<1x84xf32, #tpu.memory_space<vmem>>, vector<1x84xf32>
    %123 = arith.addf %121, %122 : vector<1x84xf32>
    %cst_26 = arith.constant 0.000000e+00 : f32
    %124 = vector.broadcast %cst_26 : f32 to vector<1x84xf32>
    %125 = arith.maximumf %123, %124 : vector<1x84xf32>
    %126 = arith.truncf %125 : vector<1x84xf32> to vector<1x84xbf16>
    %c0_27 = arith.constant 0 : index
    %c0_28 = arith.constant 0 : index
    %127 = vector.load %arg10[%c0_27, %c0_28] : memref<84x1xbf16, #tpu.memory_space<vmem>>, vector<84x1xbf16>
    %cst_29 = arith.constant dense<0.000000e+00> : vector<1x1xf32>
    %128 = tpu.matmul %126, %127, %cst_29 {dimension_numbers = #tpu.dot_dimension_numbers<[1], [0], [0], [1], [0, 0, 1, 1], [], []>} : vector<1x84xbf16>, vector<84x1xbf16>, vector<1x1xf32> -> vector<1x1xf32>
    %c0_30 = arith.constant 0 : index
    %c0_31 = arith.constant 0 : index
    %129 = vector.load %arg11[%c0_30, %c0_31] : memref<1x1xf32, #tpu.memory_space<vmem>>, vector<1x1xf32>
    %130 = arith.addf %128, %129 : vector<1x1xf32>
    %c0_32 = arith.constant 0 : index
    %c0_33 = arith.constant 0 : index
    %c0_34 = arith.constant 0 : index
    %131 = vector.load %arg12[%c0_32, %c0_33, %c0_34] : memref<1x1x1xf32, #tpu.memory_space<vmem>>, vector<1x1x1xf32>
    %132 = vector.shape_cast %131 : vector<1x1x1xf32> to vector<1x1xf32>
    %133 = vector.shape_cast %130 : vector<1x1xf32> to vector<1x1x1xf32>
    tpu.vector_store %arg12[%c0_32, %c0_33, %c0_34], %133 {strides = array<i32>} : memref<1x1x1xf32, #tpu.memory_space<vmem>>, vector<1x1x1xf32>,
    return
  }
  func.func @transform_0(%arg0: i32) -> (i32, i32, i32) {
    %c0_i32 = arith.constant 0 : i32
    %c0_i32_0 = arith.constant 0 : i32
    %c0_i32_1 = arith.constant 0 : i32
    return %arg0, %c0_i32, %c0_i32_0 : i32, i32, i32
  }
  func.func @transform_1(%arg0: i32) -> (i32, i32) {
    %c0_i32 = arith.constant 0 : i32
    %c0_i32_0 = arith.constant 0 : i32
    %c0_i32_1 = arith.constant 0 : i32
    return %c0_i32, %c0_i32_0 : i32, i32
  }
  func.func @transform_2(%arg0: i32) -> (i32, i32) {
    %c0_i32 = arith.constant 0 : i32
    %c0_i32_0 = arith.constant 0 : i32
    %c0_i32_1 = arith.constant 0 : i32
    return %c0_i32, %c0_i32_0 : i32, i32
  }
  func.func @transform_3(%arg0: i32) -> (i32, i32) {
    %c0_i32 = arith.constant 0 : i32
    %c0_i32_0 = arith.constant 0 : i32
    %c0_i32_1 = arith.constant 0 : i32
    return %c0_i32, %c0_i32_0 : i32, i32
  }
  func.func @transform_4(%arg0: i32) -> (i32, i32) {
    %c0_i32 = arith.constant 0 : i32
    %c0_i32_0 = arith.constant 0 : i32
    %c0_i32_1 = arith.constant 0 : i32
    return %c0_i32, %c0_i32_0 : i32, i32
  }
  func.func @transform_5(%arg0: i32) -> (i32, i32) {
    %c0_i32 = arith.constant 0 : i32
    %c0_i32_0 = arith.constant 0 : i32
    %c0_i32_1 = arith.constant 0 : i32
    return %c0_i32, %c0_i32_0 : i32, i32
  }
  func.func @transform_6(%arg0: i32) -> (i32, i32) {
    %c0_i32 = arith.constant 0 : i32
    %c0_i32_0 = arith.constant 0 : i32
    %c0_i32_1 = arith.constant 0 : i32
    return %c0_i32, %c0_i32_0 : i32, i32
  }
  func.func @transform_7(%arg0: i32) -> (i32, i32) {
    %c0_i32 = arith.constant 0 : i32
    %c0_i32_0 = arith.constant 0 : i32
    %c0_i32_1 = arith.constant 0 : i32
    return %c0_i32, %c0_i32_0 : i32, i32
  }
  func.func @transform_8(%arg0: i32) -> (i32, i32) {
    %c0_i32 = arith.constant 0 : i32
    %c0_i32_0 = arith.constant 0 : i32
    %c0_i32_1 = arith.constant 0 : i32
    return %c0_i32, %c0_i32_0 : i32, i32
  }
  func.func @transform_9(%arg0: i32) -> (i32, i32) {
    %c0_i32 = arith.constant 0 : i32
    %c0_i32_0 = arith.constant 0 : i32
    %c0_i32_1 = arith.constant 0 : i32
    return %c0_i32, %c0_i32_0 : i32, i32
  }
  func.func @transform_10(%arg0: i32) -> (i32, i32) {
    %c0_i32 = arith.constant 0 : i32
    %c0_i32_0 = arith.constant 0 : i32
    %c0_i32_1 = arith.constant 0 : i32
    return %c0_i32, %c0_i32_0 : i32, i32
  }
  func.func @transform_11(%arg0: i32) -> (i32, i32, i32) {
    %c0_i32 = arith.constant 0 : i32
    %c0_i32_0 = arith.constant 0 : i32
    %c0_i32_1 = arith.constant 0 : i32
    return %arg0, %c0_i32, %c0_i32_0 : i32, i32, i32
  }
}

</mosaic_0001>

<llo_original>
// kernel: net_forward.1
$region0: #{net_forward.1}
  #allocation0 [shape = 'u32[]', space=smem, size = 0x4, offset = 0x4, fixed_abs, tag = 'smem constant byte address 0x4 - core index']
  #allocation1 [shape = 'u32[144,128]{1,0:T(1,128)}', space=vmem, size = 0x12000, scoped, tag = 'internal scratch']
  #allocation2 [shape = 'f32[1,1]{1,0:T(1,128)S(1)}', space=vmem, size = 0x200, scoped, tag = 'scoped memory for net_forward.1']
  %s0 = inlined_call_operand.vmem [shape: bf16[2,18,180], index: 0, kind: input, shape index: {}]
  %s1 = inlined_call_operand.vmem [shape: bf16[180,144], index: 1, kind: input, shape index: {}]
  %s2 = inlined_call_operand.vmem [shape: f32[1,144], index: 2, kind: input, shape index: {}]
  %s3 = inlined_call_operand.vmem [shape: bf16[192,96], index: 3, kind: input, shape index: {}]
  %s4 = inlined_call_operand.vmem [shape: f32[1,96], index: 4, kind: input, shape index: {}]
  %s5 = inlined_call_operand.vmem [shape: bf16[64,120], index: 5, kind: input, shape index: {}]
  %s6 = inlined_call_operand.vmem [shape: f32[1,120], index: 6, kind: input, shape index: {}]
  %s7 = inlined_call_operand.vmem [shape: bf16[120,84], index: 7, kind: input, shape index: {}]
  %s8 = inlined_call_operand.vmem [shape: f32[1,84], index: 8, kind: input, shape index: {}]
  %s9 = inlined_call_operand.vmem [shape: bf16[84,1], index: 9, kind: input, shape index: {}]
  %s10 = inlined_call_operand.<no memory space> [shape: f32[1,1], index: 10, kind: input, shape index: {}]
  %s11 = inlined_call_operand.vmem [shape: f32[2,1,1], index: 11, kind: output, shape index: {}]
  %s12 = sld [smem:[#allocation0]]
  $region77: #{net_forward.1} parent=0
    _
  %s14 = ssub.s32 1, %s12
  %s15 = scalar_select 0, %s14, %s12
  %v16 = vstv %s10
  %17 = vst [vmem:[#allocation2] sm:$0x1] %v16
  loop: start=0, step=1, limit=4
  $region2: #{net_forward.1} parent=0 // loop_pre_header
    _
  $region3: #{net_forward.1} parent=0 // loop_header
    %s19 = sphi 0, %s23
    %p20 = scmp.ge.s32.totalorder %s19, 4
    %s29 = sphi 0, %s31
    %s32 = sphi 0, %s29
    %s33 = sphi 0, %s32
    %s49 = sphi 0, %s33
    %s53 = sphi 0, %s53
    %s55 = sphi 0, %s53
    %s56 = sphi 0, %s55
    %s70 = sphi 0, %s56
    %s74 = sphi 0, %s74
    %s76 = sphi 0, %s74
    %s77 = sphi 0, %s76
    %s91 = sphi 0, %s77
    %s95 = sphi 0, %s95
    %s97 = sphi 0, %s95
    %s98 = sphi 0, %s97
    %s112 = sphi 0, %s98
    %s116 = sphi 0, %s116
    %s118 = sphi 0, %s116
    %s119 = sphi 0, %s118
    %s133 = sphi 0, %s119
    %s137 = sphi 0, %s137
    %s139 = sphi 0, %s137
    %s140 = sphi 0, %s139
    %s154 = sphi 0, %s140
    %s158 = sphi 0, %s158
    %s160 = sphi 0, %s158
    %s161 = sphi 0, %s160
    %s175 = sphi 0, %s161
    %s179 = sphi 0, %s179
    %s181 = sphi 0, %s179
    %s182 = sphi 0, %s181
    %s196 = sphi 0, %s182
    %s200 = sphi 0, %s200
    %s202 = sphi 0, %s200
    %s203 = sphi 0, %s202
    %s217 = sphi 0, %s203
    %s221 = sphi 0, %s221
    %s223 = sphi 0, %s221
    %s224 = sphi 0, %s223
    %s238 = sphi 0, %s224
    %s242 = sphi 0, %s242
    %s244 = sphi 0, %s242
    %s245 = sphi 0, %s244
    %s259 = sphi 0, %s245
    %s265 = sphi 0, %s267
    %s268 = sphi 0, %s265
    %s269 = sphi 0, %s268
    %s285 = sphi 0, %s269
  $region4: #{net_forward.1} parent=0 // loop_header_branch
    %22 = sbr.rel (%p20) target = $region8
  $region5: #{net_forward.1} parent=0 // loop_body
    %s24 = ssub.s32 %s19, 1
    %s25 = ssub.s32 %s19, 2
    %s26 = sadd.s32 %s19, 1
    %s27 = ssub.s32 %s19, %s26
    %p28 = scmp.eq.s32.totalorder %s27, 0
    %s30 = sadd.s32 %s29, 1
    %s31 = scalar_select %p28, %s29, %s30
    %p34 = pneg %p28
    %p35 = scmp.eq.s32.totalorder %s19, 1
    %p36 = por %p34, %p35
    %p37 = scmp.ne.s32.totalorder %s29, %s32
    %p38 = scmp.eq.s32.totalorder %s19, 0
    %p39 = por %p37, %p38
    %p40 = scmp.ne.s32.totalorder %s29, %s32
    %p41 = scmp.eq.s32.totalorder %s24, 1
    %p42 = por %p40, %p41
    %p43 = scmp.ne.s32.totalorder %s32, %s33
    %p44 = scmp.eq.s32.totalorder %s24, 0
    %p45 = por %p43, %p44
    %p46 = scmp.ne.s32.totalorder %s32, %s33
    %p47 = scmp.eq.s32.totalorder %s25, 1
    %p48 = por %p46, %p47
    %p50 = scmp.ne.s32.totalorder %s33, %s49
    %p51 = scmp.eq.s32.totalorder %s25, 0
    %p52 = por %p50, %p51
    %s54 = sadd.s32 %s53, 1
    %p57 = scmp.eq.s32.totalorder %s19, 1
    %p58 = scmp.ne.s32.totalorder %s53, %s55
    %p59 = scmp.eq.s32.totalorder %s19, 0
    %p60 = por %p58, %p59
    %p61 = scmp.ne.s32.totalorder %s53, %s55
    %p62 = scmp.eq.s32.totalorder %s24, 1
    %p63 = por %p61, %p62
    %p64 = scmp.ne.s32.totalorder %s55, %s56
    %p65 = scmp.eq.s32.totalorder %s24, 0
    %p66 = por %p64, %p65
    %p67 = scmp.ne.s32.totalorder %s55, %s56
    %p68 = scmp.eq.s32.totalorder %s25, 1
    %p69 = por %p67, %p68
    %p71 = scmp.ne.s32.totalorder %s56, %s70
    %p72 = scmp.eq.s32.totalorder %s25, 0
    %p73 = por %p71, %p72
    %s75 = sadd.s32 %s74, 1
    %p78 = scmp.eq.s32.totalorder %s19, 1
    %p79 = scmp.ne.s32.totalorder %s74, %s76
    %p80 = scmp.eq.s32.totalorder %s19, 0
    %p81 = por %p79, %p80
    %p82 = scmp.ne.s32.totalorder %s74, %s76
    %p83 = scmp.eq.s32.totalorder %s24, 1
    %p84 = por %p82, %p83
    %p85 = scmp.ne.s32.totalorder %s76, %s77
    %p86 = scmp.eq.s32.totalorder %s24, 0
    %p87 = por %p85, %p86
    %p88 = scmp.ne.s32.totalorder %s76, %s77
    %p89 = scmp.eq.s32.totalorder %s25, 1
    %p90 = por %p88, %p89
    %p92 = scmp.ne.s32.totalorder %s77, %s91
    %p93 = scmp.eq.s32.totalorder %s25, 0
    %p94 = por %p92, %p93
    %s96 = sadd.s32 %s95, 1
    %p99 = scmp.eq.s32.totalorder %s19, 1
    %p100 = scmp.ne.s32.totalorder %s95, %s97
    %p101 = scmp.eq.s32.totalorder %s19, 0
    %p102 = por %p100, %p101
    %p103 = scmp.ne.s32.totalorder %s95, %s97
    %p104 = scmp.eq.s32.totalorder %s24, 1
    %p105 = por %p103, %p104
    %p106 = scmp.ne.s32.totalorder %s97, %s98
    %p107 = scmp.eq.s32.totalorder %s24, 0
    %p108 = por %p106, %p107
    %p109 = scmp.ne.s32.totalorder %s97, %s98
    %p110 = scmp.eq.s32.totalorder %s25, 1
    %p111 = por %p109, %p110
    %p113 = scmp.ne.s32.totalorder %s98, %s112
    %p114 = scmp.eq.s32.totalorder %s25, 0
    %p115 = por %p113, %p114
    %s117 = sadd.s32 %s116, 1
    %p120 = scmp.eq.s32.totalorder %s19, 1
    %p121 = scmp.ne.s32.totalorder %s116, %s118
    %p122 = scmp.eq.s32.totalorder %s19, 0
    %p123 = por %p121, %p122
    %p124 = scmp.ne.s32.totalorder %s116, %s118
    %p125 = scmp.eq.s32.totalorder %s24, 1
    %p126 = por %p124, %p125
    %p127 = scmp.ne.s32.totalorder %s118, %s119
    %p128 = scmp.eq.s32.totalorder %s24, 0
    %p129 = por %p127, %p128
    %p130 = scmp.ne.s32.totalorder %s118, %s119
    %p131 = scmp.eq.s32.totalorder %s25, 1
    %p132 = por %p130, %p131
    %p134 = scmp.ne.s32.totalorder %s119, %s133
    %p135 = scmp.eq.s32.totalorder %s25, 0
    %p136 = por %p134, %p135
    %s138 = sadd.s32 %s137, 1
    %p141 = scmp.eq.s32.totalorder %s19, 1
    %p142 = scmp.ne.s32.totalorder %s137, %s139
    %p143 = scmp.eq.s32.totalorder %s19, 0
    %p144 = por %p142, %p143
    %p145 = scmp.ne.s32.totalorder %s137, %s139
    %p146 = scmp.eq.s32.totalorder %s24, 1
    %p147 = por %p145, %p146
    %p148 = scmp.ne.s32.totalorder %s139, %s140
    %p149 = scmp.eq.s32.totalorder %s24, 0
    %p150 = por %p148, %p149
    %p151 = scmp.ne.s32.totalorder %s139, %s140
    %p152 = scmp.eq.s32.totalorder %s25, 1
    %p153 = por %p151, %p152
    %p155 = scmp.ne.s32.totalorder %s140, %s154
    %p156 = scmp.eq.s32.totalorder %s25, 0
    %p157 = por %p155, %p156
    %s159 = sadd.s32 %s158, 1
    %p162 = scmp.eq.s32.totalorder %s19, 1
    %p163 = scmp.ne.s32.totalorder %s158, %s160
    %p164 = scmp.eq.s32.totalorder %s19, 0
    %p165 = por %p163, %p164
    %p166 = scmp.ne.s32.totalorder %s158, %s160
    %p167 = scmp.eq.s32.totalorder %s24, 1
    %p168 = por %p166, %p167
    %p169 = scmp.ne.s32.totalorder %s160, %s161
    %p170 = scmp.eq.s32.totalorder %s24, 0
    %p171 = por %p169, %p170
    %p172 = scmp.ne.s32.totalorder %s160, %s161
    %p173 = scmp.eq.s32.totalorder %s25, 1
    %p174 = por %p172, %p173
    %p176 = scmp.ne.s32.totalorder %s161, %s175
    %p177 = scmp.eq.s32.totalorder %s25, 0
    %p178 = por %p176, %p177
    %s180 = sadd.s32 %s179, 1
    %p183 = scmp.eq.s32.totalorder %s19, 1
    %p184 = scmp.ne.s32.totalorder %s179, %s181
    %p185 = scmp.eq.s32.totalorder %s19, 0
    %p186 = por %p184, %p185
    %p187 = scmp.ne.s32.totalorder %s179, %s181
    %p188 = scmp.eq.s32.totalorder %s24, 1
    %p189 = por %p187, %p188
    %p190 = scmp.ne.s32.totalorder %s181, %s182
    %p191 = scmp.eq.s32.totalorder %s24, 0
    %p192 = por %p190, %p191
    %p193 = scmp.ne.s32.totalorder %s181, %s182
    %p194 = scmp.eq.s32.totalorder %s25, 1
    %p195 = por %p193, %p194
    %p197 = scmp.ne.s32.totalorder %s182, %s196
    %p198 = scmp.eq.s32.totalorder %s25, 0
    %p199 = por %p197, %p198
    %s201 = sadd.s32 %s200, 1
    %p204 = scmp.eq.s32.totalorder %s19, 1
    %p205 = scmp.ne.s32.totalorder %s200, %s202
    %p206 = scmp.eq.s32.totalorder %s19, 0
    %p207 = por %p205, %p206
    %p208 = scmp.ne.s32.totalorder %s200, %s202
    %p209 = scmp.eq.s32.totalorder %s24, 1
    %p210 = por %p208, %p209
    %p211 = scmp.ne.s32.totalorder %s202, %s203
    %p212 = scmp.eq.s32.totalorder %s24, 0
    %p213 = por %p211, %p212
    %p214 = scmp.ne.s32.totalorder %s202, %s203
    %p215 = scmp.eq.s32.totalorder %s25, 1
    %p216 = por %p214, %p215
    %p218 = scmp.ne.s32.totalorder %s203, %s217
    %p219 = scmp.eq.s32.totalorder %s25, 0
    %p220 = por %p218, %p219
    %s222 = sadd.s32 %s221, 1
    %p225 = scmp.eq.s32.totalorder %s19, 1
    %p226 = scmp.ne.s32.totalorder %s221, %s223
    %p227 = scmp.eq.s32.totalorder %s19, 0
    %p228 = por %p226, %p227
    %p229 = scmp.ne.s32.totalorder %s221, %s223
    %p230 = scmp.eq.s32.totalorder %s24, 1
    %p231 = por %p229, %p230
    %p232 = scmp.ne.s32.totalorder %s223, %s224
    %p233 = scmp.eq.s32.totalorder %s24, 0
    %p234 = por %p232, %p233
    %p235 = scmp.ne.s32.totalorder %s223, %s224
    %p236 = scmp.eq.s32.totalorder %s25, 1
    %p237 = por %p235, %p236
    %p239 = scmp.ne.s32.totalorder %s224, %s238
    %p240 = scmp.eq.s32.totalorder %s25, 0
    %p241 = por %p239, %p240
    %s243 = sadd.s32 %s242, 1
    %p246 = scmp.eq.s32.totalorder %s19, 1
    %p247 = scmp.ne.s32.totalorder %s242, %s244
    %p248 = scmp.eq.s32.totalorder %s19, 0
    %p249 = por %p247, %p248
    %p250 = scmp.ne.s32.totalorder %s242, %s244
    %p251 = scmp.eq.s32.totalorder %s24, 1
    %p252 = por %p250, %p251
    %p253 = scmp.ne.s32.totalorder %s244, %s245
    %p254 = scmp.eq.s32.totalorder %s24, 0
    %p255 = por %p253, %p254
    %p256 = scmp.ne.s32.totalorder %s244, %s245
    %p257 = scmp.eq.s32.totalorder %s25, 1
    %p258 = por %p256, %p257
    %p260 = scmp.ne.s32.totalorder %s245, %s259
    %p261 = scmp.eq.s32.totalorder %s25, 0
    %p262 = por %p260, %p261
    %s263 = ssub.s32 %s19, %s26
    %p264 = scmp.eq.s32.totalorder %s263, 0
    %s266 = sadd.s32 %s265, 1
    %s267 = scalar_select %p264, %s265, %s266
    %p270 = pneg %p264
    %p271 = scmp.eq.s32.totalorder %s19, 1
    %p272 = por %p270, %p271
    %p273 = scmp.ne.s32.totalorder %s265, %s268
    %p274 = scmp.eq.s32.totalorder %s19, 0
    %p275 = por %p273, %p274
    %p276 = scmp.ne.s32.totalorder %s265, %s268
    %p277 = scmp.eq.s32.totalorder %s24, 1
    %p278 = por %p276, %p277
    %p279 = scmp.ne.s32.totalorder %s268, %s269
    %p280 = scmp.eq.s32.totalorder %s24, 0
    %p281 = por %p279, %p280
    %p282 = scmp.ne.s32.totalorder %s268, %s269
    %p283 = scmp.eq.s32.totalorder %s25, 1
    %p284 = por %p282, %p283
    %p286 = scmp.ne.s32.totalorder %s269, %s285
    %p287 = scmp.eq.s32.totalorder %s25, 0
    %p288 = por %p286, %p287
    %p289 = scmp.le.s32.totalorder 1, %s19
    %p290 = scmp.lt.s32.totalorder %s19, 3
    %p291 = pnand %p289, %p290
    %p292 = pneg %p291
    // Predicated region
    $region9: #{net_forward.1} parent=5 // pred_check
      _
    $region10: #{net_forward.1} parent=5 // pred_check_branch
      %294 = sbr.rel (%p291) target = $region12
    $region11: #{net_forward.1} parent=5 // pred_region
      %s295 = ssub.s32 %s19, 1
      // Predicated region
      $region13: #{net_forward.1} parent=11 // pred_check
        %p296 = pneg %p66
      $region14: #{net_forward.1} parent=11 // pred_check_branch
        %298 = sbr.rel (%p296) target = $region16
      $region15: #{net_forward.1} parent=11 // pred_region
        _
      $region16: #{net_forward.1} parent=11 // pred_fallthru
        _
      // Predicated region
      $region17: #{net_forward.1} parent=11 // pred_check
        %p299 = pneg %p87
      $region18: #{net_forward.1} parent=11 // pred_check_branch
        %301 = sbr.rel (%p299) target = $region20
      $region19: #{net_forward.1} parent=11 // pred_region
        _
      $region20: #{net_forward.1} parent=11 // pred_fallthru
        _
      // Predicated region
      $region21: #{net_forward.1} parent=11 // pred_check
        %p302 = pneg %p108
      $region22: #{net_forward.1} parent=11 // pred_check_branch
        %304 = sbr.rel (%p302) target = $region24
      $region23: #{net_forward.1} parent=11 // pred_region
        _
      $region24: #{net_forward.1} parent=11 // pred_fallthru
        _
      // Predicated region
      $region25: #{net_forward.1} parent=11 // pred_check
        %p305 = pneg %p129
      $region26: #{net_forward.1} parent=11 // pred_check_branch
        %307 = sbr.rel (%p305) target = $region28
      $region27: #{net_forward.1} parent=11 // pred_region
        _
      $region28: #{net_forward.1} parent=11 // pred_fallthru
        _
      // Predicated region
      $region29: #{net_forward.1} parent=11 // pred_check
        %p308 = pneg %p150
      $region30: #{net_forward.1} parent=11 // pred_check_branch
        %310 = sbr.rel (%p308) target = $region32
      $region31: #{net_forward.1} parent=11 // pred_region
        _
      $region32: #{net_forward.1} parent=11 // pred_fallthru
        _
      // Predicated region
      $region33: #{net_forward.1} parent=11 // pred_check
        %p311 = pneg %p171
      $region34: #{net_forward.1} parent=11 // pred_check_branch
        %313 = sbr.rel (%p311) target = $region36
      $region35: #{net_forward.1} parent=11 // pred_region
        _
      $region36: #{net_forward.1} parent=11 // pred_fallthru
        _
      // Predicated region
      $region37: #{net_forward.1} parent=11 // pred_check
        %p314 = pneg %p192
      $region38: #{net_forward.1} parent=11 // pred_check_branch
        %316 = sbr.rel (%p314) target = $region40
      $region39: #{net_forward.1} parent=11 // pred_region
        _
      $region40: #{net_forward.1} parent=11 // pred_fallthru
        _
      // Predicated region
      $region41: #{net_forward.1} parent=11 // pred_check
        %p317 = pneg %p213
      $region42: #{net_forward.1} parent=11 // pred_check_branch
        %319 = sbr.rel (%p317) target = $region44
      $region43: #{net_forward.1} parent=11 // pred_region
        _
      $region44: #{net_forward.1} parent=11 // pred_fallthru
        _
      // Predicated region
      $region45: #{net_forward.1} parent=11 // pred_check
        %p320 = pneg %p234
      $region46: #{net_forward.1} parent=11 // pred_check_branch
        %322 = sbr.rel (%p320) target = $region48
      $region47: #{net_forward.1} parent=11 // pred_region
        _
      $region48: #{net_forward.1} parent=11 // pred_fallthru
        _
      // Predicated region
      $region49: #{net_forward.1} parent=11 // pred_check
        %p323 = pneg %p255
      $region50: #{net_forward.1} parent=11 // pred_check_branch
        %325 = sbr.rel (%p323) target = $region52
      $region51: #{net_forward.1} parent=11 // pred_region
        _
      $region52: #{net_forward.1} parent=11 // pred_fallthru
        _
    $region12: #{net_forward.1} parent=5 // pred_fallthru
      _
    %p326 = scmp.lt.s32.totalorder %s19, 2
    // Predicated region
    $region53: #{net_forward.1} parent=5 // pred_check
      %p327 = pneg %p326
    $region54: #{net_forward.1} parent=5 // pred_check_branch
      %329 = sbr.rel (%p327) target = $region56
    $region55: #{net_forward.1} parent=5 // pred_region
      // Predicated region
      $region57: #{net_forward.1} parent=55 // pred_check
        %p330 = pneg %p39
      $region58: #{net_forward.1} parent=55 // pred_check_branch
        %332 = sbr.rel (%p330) target = $region60
      $region59: #{net_forward.1} parent=55 // pred_region
        %p333 = scmp.lt.s32.totalorder %s19, 1
        %s334 = scalar_select %p333, %s19, 1
        %s335 = smul.addr %s334, 6
        %s336 = smul.addr %s335, 4
        %s337 = scalar_lea.vmem %s0, %s336
      $region60: #{net_forward.1} parent=55 // pred_fallthru
        _
    $region56: #{net_forward.1} parent=5 // pred_fallthru
      _
    %p338 = scmp.le.s32.totalorder 1, %s19
    %p339 = scmp.lt.s32.totalorder %s19, 3
    %p340 = pnand %p338, %p339
    %p341 = pneg %p340
    // Predicated region
    $region61: #{net_forward.1} parent=5 // pred_check
      _
    $region62: #{net_forward.1} parent=5 // pred_check_branch
      %343 = sbr.rel (%p340) target = $region64
    $region63: #{net_forward.1} parent=5 // pred_region
      %s344 = ssub.s32 %s19, 1
      %p345 = scmp.lt.s32.totalorder %s24, 1
      %s346 = scalar_select %p345, %s24, 1
      %s347 = smul.addr %s346, 6
      %s348 = smul.addr %s347, 4
      %s349 = scalar_lea.vmem %s0, %s348
      %p350 = pneg %p45
      %p351 = pneg %p42
      %p352 = pneg %p66
      %p353 = pneg %p63
      %p354 = pneg %p87
      %p355 = pneg %p84
      %p356 = pneg %p108
      %p357 = pneg %p105
      %p358 = pneg %p129
      %p359 = pneg %p126
      %p360 = pneg %p150
      %p361 = pneg %p147
      %p362 = pneg %p171
      %p363 = pneg %p168
      %p364 = pneg %p192
      %p365 = pneg %p189
      %p366 = pneg %p213
      %p367 = pneg %p210
      %p368 = pneg %p234
      %p369 = pneg %p231
      %p370 = pneg %p255
      %p371 = pneg %p252
      %p372 = pneg %p281
      %p373 = pneg %p278
      %p374 = scmp.lt.s32.totalorder %s24, 1
      %s375 = scalar_select %p374, %s24, 1
      %s376 = scalar_lea.vmem %s11, %s375
      %p377 = scmp.lt.s32.totalorder %s24, 1
      %s378 = scalar_select %p377, %s24, 1
      %s379 = smul.addr %s378, 6
      %s380 = smul.addr %s379, 4
      %s381 = scalar_lea.vmem %s0, %s380
      %p382 = scmp.lt.s32.totalorder %s24, 1
      %s383 = scalar_select %p382, %s24, 1
      %s384 = scalar_lea.vmem %s11, %s383
      %v386 = vld [vmem:[%s381] sm:$0xff]
      %v387 = vld [vmem:[%s381 + $0x8] sm:$0xff]
      %v388 = vld [vmem:[%s381 + $0x10] sm:$0x11]
      %v389 = vld [vmem:[%s1] sm:$0xff]
      %v390 = vld [vmem:[%s1 + $0x8] sm:$0xff]
      %v391 = vld [vmem:[%s1 + $0x10] sm:$0xff]
      %v392 = vld [vmem:[%s1 + $0x18] sm:$0xff]
      %v393 = vld [vmem:[%s1 + $0x20] sm:$0xff]
      %v394 = vld [vmem:[%s1 + $0x28] sm:$0xff]
      %v395 = vld [vmem:[%s1 + $0x30] sm:$0xff]
      %v396 = vld [vmem:[%s1 + $0x38] sm:$0xff]
      %v397 = vld [vmem:[%s1 + $0x40] sm:$0xff]
      %v398 = vld [vmem:[%s1 + $0x48] sm:$0xff]
      %v399 = vld [vmem:[%s1 + $0x50] sm:$0xff]
      %v400 = vld [vmem:[%s1 + $0x58] sm:$0xff]
      %v401 = vld [vmem:[%s1 + $0x60] sm:$0xff]
      %v402 = vld [vmem:[%s1 + $0x68] sm:$0xff]
      %v403 = vld [vmem:[%s1 + $0x70] sm:$0xff]
      %v404 = vld [vmem:[%s1 + $0x78] sm:$0xff]
      %v405 = vld [vmem:[%s1 + $0x80] sm:$0xff]
      %v406 = vld [vmem:[%s1 + $0x88] sm:$0xff]
      %v407 = vld [vmem:[%s1 + $0x90] sm:$0xff]
      %v408 = vld [vmem:[%s1 + $0x98] sm:$0xff]
      %v409 = vld [vmem:[%s1 + $0xa0] sm:$0xff]
      %v410 = vld [vmem:[%s1 + $0xa8] sm:$0xff]
      %v411 = vld [vmem:[%s1 + $0xb0] sm:$0x33]
      %v412 = vld [vmem:[%s2] sm:$0x3]
      %v414 = vlaneseq
      %v415 = vshrl.u32 %v414, 7
      %v416 = vsub.s32 0, %v415
      %v417 = vrot.slane %v412, %v416
      %v418 = vlaneseq
      %v419 = vshrl.u32 %v418, 7
      %v420 = vsub.s32 1, %v419
      %v421 = vrot.slane %v412, %v420
      %v427 = vunpack.c.l.b16 %v386
      %v428 = vunpack.c.h.b16 %v386
      %v429 = vunpack.c.l.b16 %v387
      %v430 = vunpack.c.h.b16 %v387
      %v431 = vunpack.c.l.b16 %v388
      %v432 = vunpack.c.h.b16 %v388
      %v433 = vpack.c.b16 %v429, %v427
      %v434 = vpack.c.b16 %v430, %v428
      %v435 = vpack.c.b16 %v431, %v431
      %v436 = vpack.c.b16 %v432, %v432
      %v462 = vunpack.c.l.b16 %v389
      %v463 = vunpack.c.h.b16 %v389
      %v464 = vunpack.c.l.b16 %v390
      %v465 = vunpack.c.h.b16 %v390
      %v466 = vunpack.c.l.b16 %v391
      %v467 = vunpack.c.h.b16 %v391
      %v468 = vunpack.c.l.b16 %v392
      %v469 = vunpack.c.h.b16 %v392
      %v470 = vunpack.c.l.b16 %v393
      %v471 = vunpack.c.h.b16 %v393
      %v472 = vunpack.c.l.b16 %v394
      %v473 = vunpack.c.h.b16 %v394
      %v474 = vunpack.c.l.b16 %v395
      %v475 = vunpack.c.h.b16 %v395
      %v476 = vunpack.c.l.b16 %v396
      %v477 = vunpack.c.h.b16 %v396
      %v478 = vunpack.c.l.b16 %v397
      %v479 = vunpack.c.h.b16 %v397
      %v480 = vunpack.c.l.b16 %v398
      %v481 = vunpack.c.h.b16 %v398
      %v482 = vunpack.c.l.b16 %v399
      %v483 = vunpack.c.h.b16 %v399
      %v484 = vunpack.c.l.b16 %v400
      %v485 = vunpack.c.h.b16 %v400
      %v486 = vunpack.c.l.b16 %v401
      %v487 = vunpack.c.h.b16 %v401
      %v488 = vunpack.c.l.b16 %v402
      %v489 = vunpack.c.h.b16 %v402
      %v490 = vunpack.c.l.b16 %v403
      %v491 = vunpack.c.h.b16 %v403
      %v492 = vunpack.c.l.b16 %v404
      %v493 = vunpack.c.h.b16 %v404
      %v494 = vunpack.c.l.b16 %v405
      %v495 = vunpack.c.h.b16 %v405
      %v496 = vunpack.c.l.b16 %v406
      %v497 = vunpack.c.h.b16 %v406
      %v498 = vunpack.c.l.b16 %v407
      %v499 = vunpack.c.h.b16 %v407
      %v500 = vunpack.c.l.b16 %v408
      %v501 = vunpack.c.h.b16 %v408
      %v502 = vunpack.c.l.b16 %v409
      %v503 = vunpack.c.h.b16 %v409
      %v504 = vunpack.c.l.b16 %v410
      %v505 = vunpack.c.h.b16 %v410
      %v506 = vunpack.c.l.b16 %v411
      %v507 = vunpack.c.h.b16 %v411
      %v508 = vpack.c.b16 %v464, %v462
      %v509 = vpack.c.b16 %v465, %v463
      %v510 = vpack.c.b16 %v468, %v466
      %v511 = vpack.c.b16 %v469, %v467
      %v512 = vpack.c.b16 %v472, %v470
      %v513 = vpack.c.b16 %v473, %v471
      %v514 = vpack.c.b16 %v476, %v474
      %v515 = vpack.c.b16 %v477, %v475
      %v516 = vpack.c.b16 %v480, %v478
      %v517 = vpack.c.b16 %v481, %v479
      %v518 = vpack.c.b16 %v484, %v482
      %v519 = vpack.c.b16 %v485, %v483
      %v520 = vpack.c.b16 %v488, %v486
      %v521 = vpack.c.b16 %v489, %v487
      %v522 = vpack.c.b16 %v492, %v490
      %v523 = vpack.c.b16 %v493, %v491
      %v524 = vpack.c.b16 %v496, %v494
      %v525 = vpack.c.b16 %v497, %v495
      %v526 = vpack.c.b16 %v500, %v498
      %v527 = vpack.c.b16 %v501, %v499
      %v528 = vpack.c.b16 %v504, %v502
      %v529 = vpack.c.b16 %v505, %v503
      %v530 = vpack.c.b16 %v506, %v506
      %v531 = vpack.c.b16 %v507, %v507
      %vm554 = vcmask 424960
      %v556 = vsel %vm554, %v434, 0
      %v559 = vsel %vm554, %v436, 0
      %vm561 = vcmask 1041408
      %v563 = vsel %vm561, %v530, 0
      %v566 = vsel %vm561, %v531, 0
      %568 = vmatprep.subr.bf16.mxu0 %v523
      %569 = vmatpush1.bf16.msra.mxu0 %v522
      %570 = vmatprep.subr.bf16.mxu0 %v521
      %571 = vmatpush1.bf16.msra.mxu0 %v520
      %572 = vmatprep.subr.bf16.mxu0 %v519
      %573 = vmatpush1.bf16.msra.mxu0 %v518
      %574 = vmatprep.subr.bf16.mxu0 %v517
      %575 = vmatpush1.bf16.msra.mxu0 %v516
      %576 = vmatprep.subr.bf16.mxu0 %v515
      %577 = vmatpush1.bf16.msra.mxu0 %v514
      %578 = vmatprep.subr.bf16.mxu0 %v513
      %579 = vmatpush1.bf16.msra.mxu0 %v512
      %580 = vmatprep.subr.bf16.mxu0 %v511
      %581 = vmatpush1.bf16.msra.mxu0 %v510
      %582 = vmatprep.subr.bf16.mxu0 %v509
      %583 = vmatpush1.bf16.msra.mxu0 %v508
      %584 = vmatprep.subr.bf16.mxu0 0
      %585 = vmatpush2.bf16.msra.mxu0 0
      %586 = vmatprep.subr.bf16.mxu0 0
      %587 = vmatpush2.bf16.msra.mxu0 0
      %588 = vmatprep.subr.bf16.mxu0 0
      %589 = vmatpush2.bf16.msra.mxu0 0
      %590 = vmatprep.subr.bf16.mxu0 0
      %591 = vmatpush2.bf16.msra.mxu0 0
      %592 = vmatprep.subr.bf16.mxu0 %v566
      %593 = vmatpush2.bf16.msra.mxu0 %v563
      %594 = vmatprep.subr.bf16.mxu0 %v529
      %595 = vmatpush2.bf16.msra.mxu0 %v528
      %596 = vmatprep.subr.bf16.mxu0 %v527
      %597 = vmatpush2.bf16.msra.mxu0 %v526
      %598 = vmatprep.subr.bf16.mxu0 %v525
      %599 = vmatpush2.bf16.msra.mxu0 %v524
      %600 = vmatprep.mubr.bf16.mxu0 %v556
      %601 = vmatmul.mubr.bf16.gmra.mxu0 %v433
      %v602 = vpop.f32.mrf.mxu0
      %v603 = vadd.f32 %v417, %v602
      %v604 = vpop.f32.mrf.mxu0
      %v605 = vadd.f32 %v421, %v604
      %v606 = vpop.f32.mrf.mxu0
      %v607 = vadd.f32 %v417, %v606
      %v608 = vpop.f32.mrf.mxu0
      %v609 = vadd.f32 %v421, %v608
      %610 = vmatprep.mubr.bf16.mxu0 %v559
      %611 = vmatmul.mubr.bf16.gmra.mxu0 %v435
      %v612 = vpop.f32.mrf.mxu0
      %v613 = vadd.f32 %v417, %v612
      %v614 = vpop.f32.mrf.mxu0
      %v615 = vadd.f32 %v421, %v614
      %v616 = vpop.f32.mrf.mxu0
      %v617 = vpop.f32.mrf.mxu0
      %618 = vdwg.mxu0
      %v619 = vmax.f32 %v603, 0.0
      %v620 = vmax.f32 %v605, 0.0
      %v621 = vmax.f32 %v607, 0.0
      %v622 = vmax.f32 %v609, 0.0
      %v623 = vmax.f32 %v613, 0.0
      %v624 = vmax.f32 %v615, 0.0
      %628 = vrot.lane.b32.xlu0 %v619, 120
      %v629 = vpop.permute.xlu0 %628
      %630 = vrot.lane.b32.xlu0 %v621, 120
      %v631 = vpop.permute.xlu0 %630
      %632 = vrot.lane.b32.xlu0 %v623, 120
      %v633 = vpop.permute.xlu0 %632
      %v637 = vmax.f32 %v619, %v629
      %v638 = vmax.f32 %v621, %v631
      %v639 = vmax.f32 %v623, %v633
      %640 = vrot.lane.b32.xlu0 %v619, 112
      %v641 = vpop.permute.xlu0 %640
      %642 = vrot.lane.b32.xlu0 %v621, 112
      %v643 = vpop.permute.xlu0 %642
      %644 = vrot.lane.b32.xlu0 %v623, 112
      %v645 = vpop.permute.xlu0 %644
      %v649 = vmax.f32 %v637, %v641
      %v650 = vmax.f32 %v638, %v643
      %v651 = vmax.f32 %v639, %v645
      %655 = vrot.lane.b32.xlu0 %v620, 120
      %v656 = vpop.permute.xlu0 %655
      %657 = vrot.lane.b32.xlu0 %v622, 120
      %v658 = vpop.permute.xlu0 %657
      %659 = vrot.lane.b32.xlu0 %v624, 120
      %v660 = vpop.permute.xlu0 %659
      %v664 = vmax.f32 %v619, %v656
      %v665 = vmax.f32 %v621, %v658
      %v666 = vmax.f32 %v623, %v660
      %667 = vrot.lane.b32.xlu0 %v620, 112
      %v668 = vpop.permute.xlu0 %667
      %669 = vrot.lane.b32.xlu0 %v622, 112
      %v670 = vpop.permute.xlu0 %669
      %671 = vrot.lane.b32.xlu0 %v624, 112
      %v672 = vpop.permute.xlu0 %671
      %v676 = vmax.f32 %v664, %v668
      %v677 = vmax.f32 %v665, %v670
      %v678 = vmax.f32 %v666, %v672
      %682 = vrot.lane.b32.xlu0 %v649, 112
      %v683 = vpop.permute.xlu0 %682
      %684 = vrot.lane.b32.xlu0 %v650, 112
      %v685 = vpop.permute.xlu0 %684
      %686 = vrot.lane.b32.xlu0 %v651, 112
      %v687 = vpop.permute.xlu0 %686
      %691 = vrot.lane.b32.xlu0 %v649, 96
      %v692 = vpop.permute.xlu0 %691
      %693 = vrot.lane.b32.xlu0 %v650, 96
      %v694 = vpop.permute.xlu0 %693
      %695 = vrot.lane.b32.xlu0 %v651, 96
      %v696 = vpop.permute.xlu0 %695
      %700 = vrot.lane.b32.xlu0 %v649, 80
      %v701 = vpop.permute.xlu0 %700
      %702 = vrot.lane.b32.xlu0 %v650, 80
      %v703 = vpop.permute.xlu0 %702
      %704 = vrot.lane.b32.xlu0 %v651, 80
      %v705 = vpop.permute.xlu0 %704
      %709 = vrot.lane.b32.xlu0 %v649, 64
      %v710 = vpop.permute.xlu0 %709
      %711 = vrot.lane.b32.xlu0 %v650, 64
      %v712 = vpop.permute.xlu0 %711
      %713 = vrot.lane.b32.xlu0 %v651, 64
      %v714 = vpop.permute.xlu0 %713
      %721 = vrot.lane.b32.xlu0 %v676, 48
      %v722 = vpop.permute.xlu0 %721
      %723 = vrot.lane.b32.xlu0 %v677, 48
      %v724 = vpop.permute.xlu0 %723
      %725 = vrot.lane.b32.xlu0 %v678, 48
      %v726 = vpop.permute.xlu0 %725
      %vm730 = vcmask 64512
      %v731 = vsel %vm730, %v649, %v683
      %v732 = vsel %vm730, %v650, %v685
      %v733 = vsel %vm730, %v651, %v687
      %vm734 = vcmask 130048
      %v735 = vsel %vm734, %v731, %v692
      %v736 = vsel %vm734, %v732, %v694
      %v737 = vsel %vm734, %v733, %v696
      %vm738 = vcmask 195584
      %v739 = vsel %vm738, %v735, %v701
      %v740 = vsel %vm738, %v736, %v703
      %v741 = vsel %vm738, %v737, %v705
      %vm742 = vcmask 261120
      %v743 = vsel %vm742, %v739, %v710
      %v744 = vsel %vm742, %v740, %v712
      %v745 = vsel %vm742, %v741, %v714
      %vm746 = vcmask 326656
      %v747 = vsel %vm746, %v743, %v722
      %v748 = vsel %vm746, %v744, %v724
      %v749 = vsel %vm746, %v745, %v726
      %v751 = vrot.slane %v747, 1
      %v753 = vmax.f32 %v747, %v751
      %v754 = vrot.slane %v747, 2
      %v756 = vmax.f32 %v753, %v754
      %v758 = vrot.slane %v748, 2
      %v760 = vmax.f32 %v753, %v758
      %v761 = vrot.slane %v748, 1
      %v763 = vmax.f32 %v748, %v761
      %v764 = vmax.f32 %v763, %v758
      %v766 = vrot.slane %v749, 1
      %v768 = vmax.f32 %v748, %v766
      %v769 = vrot.slane %v749, 2
      %v771 = vmax.f32 %v768, %v769
      %v773 = vrot.slane %v756, 2
      %v776 = vrot.slane %v760, 4
      %v779 = vrot.slane %v764, 6
      %v782 = vrot.slane %v771, 2
      %vm784 = vcmask 1040384
      %v785 = vsel %vm784, %v756, %v773
      %v786 = vsel %vm561, %v785, %v776
      %vm787 = vcmask 1042432
      %v788 = vsel %vm787, %v786, %v779
      %vm789 = vcmask 1043456
      %v790 = vsel %vm789, %v788, %v764
      %vm791 = vcmask 1044480
      %v792 = vsel %vm791, %v790, %v782
      %794 = vrot.lane.b32.xlu0 %v792, 8
      %v795 = vpop.permute.xlu0 %794
      %v797 = vsel %vm730, 0.0, %v795
      %vm798 = vcmask 457728
      %v799 = vsel %vm798, %v797, 0.0
      %v801 = vrot.slane %v799, 7
      %v803 = vsel %vm784, 0.0, %v801
      %vm804 = vcmask 1046528
      %v805 = vsel %vm804, %v803, 0.0
      %v807 = vrot.slane %v805, 1
      %808 = vrot.lane.b32.xlu0 %v807, 64
      %v809 = vpop.permute.xlu0 %808
      %v811 = vrot.slane %v805, 2
      %vm813 = vcmask 523264
      %v814 = vsel %vm813, %v805, %v809
      %v815 = vpack.c.bf16 %v814, %v814
      %v816 = vpack.c.bf16 %v811, %v811
      %v817 = vld [vmem:[%s3] sm:$0xf]
      %v818 = vld [vmem:[%s3 + $0x4] sm:$0xf]
      %v819 = vld [vmem:[%s3 + $0x8] sm:$0xf]
      %v820 = vld [vmem:[%s3 + $0xc] sm:$0xf]
      %v821 = vld [vmem:[%s3 + $0x10] sm:$0xf]
      %v822 = vld [vmem:[%s3 + $0x14] sm:$0xf]
      %v823 = vld [vmem:[%s3 + $0x18] sm:$0xf]
      %v824 = vld [vmem:[%s3 + $0x1c] sm:$0xf]
      %v825 = vld [vmem:[%s3 + $0x20] sm:$0xf]
      %v826 = vld [vmem:[%s3 + $0x24] sm:$0xf]
      %v827 = vld [vmem:[%s3 + $0x28] sm:$0xf]
      %v828 = vld [vmem:[%s3 + $0x2c] sm:$0xf]
      %v829 = vld [vmem:[%s3 + $0x30] sm:$0xf]
      %v830 = vld [vmem:[%s3 + $0x34] sm:$0xf]
      %v831 = vld [vmem:[%s3 + $0x38] sm:$0xf]
      %v832 = vld [vmem:[%s3 + $0x3c] sm:$0xf]
      %v833 = vld [vmem:[%s3 + $0x40] sm:$0xf]
      %v834 = vld [vmem:[%s3 + $0x44] sm:$0xf]
      %v835 = vld [vmem:[%s3 + $0x48] sm:$0xf]
      %v836 = vld [vmem:[%s3 + $0x4c] sm:$0xf]
      %v837 = vld [vmem:[%s3 + $0x50] sm:$0xf]
      %v838 = vld [vmem:[%s3 + $0x54] sm:$0xf]
      %v839 = vld [vmem:[%s3 + $0x58] sm:$0xf]
      %v840 = vld [vmem:[%s3 + $0x5c] sm:$0xf]
      %v841 = vld [vmem:[%s4] sm:$0x1]
      %v843 = vlaneseq
      %v844 = vshrl.u32 %v843, 7
      %v845 = vsub.s32 0, %v844
      %v846 = vrot.slane %v841, %v845
      %v872 = vunpack.c.l.b16 %v817
      %v873 = vunpack.c.l.b16 %v818
      %v874 = vunpack.c.l.b16 %v819
      %v875 = vunpack.c.l.b16 %v820
      %v876 = vunpack.c.l.b16 %v821
      %v877 = vunpack.c.l.b16 %v822
      %v878 = vunpack.c.l.b16 %v823
      %v879 = vunpack.c.l.b16 %v824
      %v880 = vunpack.c.l.b16 %v825
      %v881 = vunpack.c.l.b16 %v826
      %v882 = vunpack.c.l.b16 %v827
      %v883 = vunpack.c.l.b16 %v828
      %v884 = vunpack.c.l.b16 %v829
      %v885 = vunpack.c.l.b16 %v830
      %v886 = vunpack.c.l.b16 %v831
      %v887 = vunpack.c.l.b16 %v832
      %v888 = vunpack.c.l.b16 %v833
      %v889 = vunpack.c.l.b16 %v834
      %v890 = vunpack.c.l.b16 %v835
      %v891 = vunpack.c.l.b16 %v836
      %v892 = vunpack.c.l.b16 %v837
      %v893 = vunpack.c.l.b16 %v838
      %v894 = vunpack.c.l.b16 %v839
      %v895 = vunpack.c.l.b16 %v840
      %v896 = vpack.c.b16 %v873, %v872
      %v897 = vpack.c.b16 %v875, %v874
      %v898 = vpack.c.b16 %v877, %v876
      %v899 = vpack.c.b16 %v879, %v878
      %v900 = vpack.c.b16 %v881, %v880
      %v901 = vpack.c.b16 %v883, %v882
      %v902 = vpack.c.b16 %v885, %v884
      %v903 = vpack.c.b16 %v887, %v886
      %v904 = vpack.c.b16 %v889, %v888
      %v905 = vpack.c.b16 %v891, %v890
      %v906 = vpack.c.b16 %v893, %v892
      %v907 = vpack.c.b16 %v895, %v894
      %v921 = vsel %vm813, %v816, 0
      %923 = vmatprep.subr.bf16.mxu0 0
      %924 = vmatpush1.bf16.msra.mxu0 %v903
      %925 = vmatprep.subr.bf16.mxu0 0
      %926 = vmatpush1.bf16.msra.mxu0 %v902
      %927 = vmatprep.subr.bf16.mxu0 0
      %928 = vmatpush1.bf16.msra.mxu0 %v901
      %929 = vmatprep.subr.bf16.mxu0 0
      %930 = vmatpush1.bf16.msra.mxu0 %v900
      %931 = vmatprep.subr.bf16.mxu0 0
      %932 = vmatpush1.bf16.msra.mxu0 %v899
      %933 = vmatprep.subr.bf16.mxu0 0
      %934 = vmatpush1.bf16.msra.mxu0 %v898
      %935 = vmatprep.subr.bf16.mxu0 0
      %936 = vmatpush1.bf16.msra.mxu0 %v897
      %937 = vmatprep.subr.bf16.mxu0 0
      %938 = vmatpush1.bf16.msra.mxu0 %v896
      %939 = vmatprep.subr.bf16.mxu0 0
      %940 = vmatpush2.bf16.msra.mxu0 0
      %941 = vmatprep.subr.bf16.mxu0 0
      %942 = vmatpush2.bf16.msra.mxu0 0
      %943 = vmatprep.subr.bf16.mxu0 0
      %944 = vmatpush2.bf16.msra.mxu0 0
      %945 = vmatprep.subr.bf16.mxu0 0
      %946 = vmatpush2.bf16.msra.mxu0 0
      %947 = vmatprep.subr.bf16.mxu0 0
      %948 = vmatpush2.bf16.msra.mxu0 %v907
      %949 = vmatprep.subr.bf16.mxu0 0
      %950 = vmatpush2.bf16.msra.mxu0 %v906
      %951 = vmatprep.subr.bf16.mxu0 0
      %952 = vmatpush2.bf16.msra.mxu0 %v905
      %953 = vmatprep.subr.bf16.mxu0 0
      %954 = vmatpush2.bf16.msra.mxu0 %v904
      %955 = vmatprep.mubr.bf16.mxu0 %v921
      %956 = vmatmul.mubr.bf16.gmra.mxu0 %v815
      %v957 = vpop.f32.mrf.mxu0
      %v958 = vadd.f32 %v846, %v957
      %v959 = vpop.f32.mrf.mxu0
      %v960 = vpop.f32.mrf.mxu0
      %v961 = vpop.f32.mrf.mxu0
      %962 = vdwg.mxu0
      %v963 = vmax.f32 %v958, 0.0
      %965 = vrot.lane.b32.xlu0 %v963, 112
      %v966 = vpop.permute.xlu0 %965
      %v968 = vmax.f32 %v963, %v966
      %969 = vrot.lane.b32.xlu0 %v963, 96
      %v970 = vpop.permute.xlu0 %969
      %v972 = vmax.f32 %v968, %v970
      %974 = vrot.lane.b32.xlu0 %v972, 96
      %v975 = vpop.permute.xlu0 %974
      %v977 = vsel %vm734, %v972, %v975
      %v979 = vrot.slane %v977, 1
      %v981 = vmax.f32 %v977, %v979
      %v982 = vrot.slane %v977, 2
      %v984 = vmax.f32 %v981, %v982
      %v986 = vrot.slane %v984, 2
      %v988 = vsel %vm784, %v984, %v986
      %v990 = vrot.slane %v988, 1
      %991 = vrot.lane.b32.xlu0 %v990, 32
      %v992 = vpop.permute.xlu0 %991
      %v994 = vsel %vm742, %v988, %v992
      %v995 = vpack.c.bf16 %v994, %v994
      %v996 = vld [vmem:[%s5] sm:$0xf]
      %v997 = vld [vmem:[%s5 + $0x4] sm:$0xf]
      %v998 = vld [vmem:[%s5 + $0x8] sm:$0xf]
      %v999 = vld [vmem:[%s5 + $0xc] sm:$0xf]
      %v1000 = vld [vmem:[%s5 + $0x10] sm:$0xf]
      %v1001 = vld [vmem:[%s5 + $0x14] sm:$0xf]
      %v1002 = vld [vmem:[%s5 + $0x18] sm:$0xf]
      %v1003 = vld [vmem:[%s5 + $0x1c] sm:$0xf]
      %v1004 = vld [vmem:[%s6] sm:$0x1]
      %v1013 = vunpack.c.l.b16 %v996
      %v1014 = vunpack.c.l.b16 %v997
      %v1015 = vunpack.c.l.b16 %v998
      %v1016 = vunpack.c.l.b16 %v999
      %v1017 = vunpack.c.l.b16 %v1000
      %v1018 = vunpack.c.l.b16 %v1001
      %v1019 = vunpack.c.l.b16 %v1002
      %v1020 = vunpack.c.l.b16 %v1003
      %v1021 = vpack.c.b16 %v1014, %v1013
      %v1022 = vpack.c.b16 %v1016, %v1015
      %v1023 = vpack.c.b16 %v1018, %v1017
      %v1024 = vpack.c.b16 %v1020, %v1019
      %v1030 = vsel %vm813, %v995, 0
      %1032 = vmatprep.subr.bf16.mxu0 0
      %1033 = vmatpush1.bf16.msra.mxu0 0
      %1034 = vmatprep.subr.bf16.mxu0 0
      %1035 = vmatpush1.bf16.msra.mxu0 0
      %1036 = vmatprep.subr.bf16.mxu0 0
      %1037 = vmatpush1.bf16.msra.mxu0 0
      %1038 = vmatprep.subr.bf16.mxu0 0
      %1039 = vmatpush1.bf16.msra.mxu0 0
      %1040 = vmatprep.subr.bf16.mxu0 0
      %1041 = vmatpush1.bf16.msra.mxu0 %v1024
      %1042 = vmatprep.subr.bf16.mxu0 0
      %1043 = vmatpush1.bf16.msra.mxu0 %v1023
      %1044 = vmatprep.subr.bf16.mxu0 0
      %1045 = vmatpush1.bf16.msra.mxu0 %v1022
      %1046 = vmatprep.subr.bf16.mxu0 0
      %1047 = vmatpush1.bf16.msra.mxu0 %v1021
      %1048 = vmatprep.subr.bf16.mxu0 0
      %1049 = vmatpush2.bf16.msra.mxu0 0
      %1050 = vmatprep.subr.bf16.mxu0 0
      %1051 = vmatpush2.bf16.msra.mxu0 0
      %1052 = vmatprep.subr.bf16.mxu0 0
      %1053 = vmatpush2.bf16.msra.mxu0 0
      %1054 = vmatprep.subr.bf16.mxu0 0
      %1055 = vmatpush2.bf16.msra.mxu0 0
      %1056 = vmatprep.subr.bf16.mxu0 0
      %1057 = vmatpush2.bf16.msra.mxu0 0
      %1058 = vmatprep.subr.bf16.mxu0 0
      %1059 = vmatpush2.bf16.msra.mxu0 0
      %1060 = vmatprep.subr.bf16.mxu0 0
      %1061 = vmatpush2.bf16.msra.mxu0 0
      %1062 = vmatprep.subr.bf16.mxu0 0
      %1063 = vmatpush2.bf16.msra.mxu0 0
      %1064 = vmatprep.mubr.bf16.mxu0 0
      %1065 = vmatmul.mubr.bf16.gmra.mxu0 %v1030
      %v1066 = vpop.f32.mrf.mxu0
      %v1067 = vadd.f32 %v1004, %v1066
      %v1068 = vpop.f32.mrf.mxu0
      %v1069 = vpop.f32.mrf.mxu0
      %v1070 = vpop.f32.mrf.mxu0
      %1071 = vdwg.mxu0
      %v1072 = vmax.f32 %v1067, 0.0
      %v1073 = vpack.c.bf16 %v1072, %v1072
      %v1074 = vld [vmem:[%s7] sm:$0xf]
      %v1075 = vld [vmem:[%s7 + $0x4] sm:$0xf]
      %v1076 = vld [vmem:[%s7 + $0x8] sm:$0xf]
      %v1077 = vld [vmem:[%s7 + $0xc] sm:$0xf]
      %v1078 = vld [vmem:[%s7 + $0x10] sm:$0xf]
      %v1079 = vld [vmem:[%s7 + $0x14] sm:$0xf]
      %v1080 = vld [vmem:[%s7 + $0x18] sm:$0xf]
      %v1081 = vld [vmem:[%s7 + $0x1c] sm:$0xf]
      %v1082 = vld [vmem:[%s7 + $0x20] sm:$0xf]
      %v1083 = vld [vmem:[%s7 + $0x24] sm:$0xf]
      %v1084 = vld [vmem:[%s7 + $0x28] sm:$0xf]
      %v1085 = vld [vmem:[%s7 + $0x2c] sm:$0xf]
      %v1086 = vld [vmem:[%s7 + $0x30] sm:$0xf]
      %v1087 = vld [vmem:[%s7 + $0x34] sm:$0xf]
      %v1088 = vld [vmem:[%s7 + $0x38] sm:$0xf]
      %v1089 = vld [vmem:[%s8] sm:$0x1]
      %v1105 = vunpack.c.l.b16 %v1074
      %v1106 = vunpack.c.l.b16 %v1075
      %v1107 = vunpack.c.l.b16 %v1076
      %v1108 = vunpack.c.l.b16 %v1077
      %v1109 = vunpack.c.l.b16 %v1078
      %v1110 = vunpack.c.l.b16 %v1079
      %v1111 = vunpack.c.l.b16 %v1080
      %v1112 = vunpack.c.l.b16 %v1081
      %v1113 = vunpack.c.l.b16 %v1082
      %v1114 = vunpack.c.l.b16 %v1083
      %v1115 = vunpack.c.l.b16 %v1084
      %v1116 = vunpack.c.l.b16 %v1085
      %v1117 = vunpack.c.l.b16 %v1086
      %v1118 = vunpack.c.l.b16 %v1087
      %v1119 = vunpack.c.l.b16 %v1088
      %v1120 = vpack.c.b16 %v1106, %v1105
      %v1121 = vpack.c.b16 %v1108, %v1107
      %v1122 = vpack.c.b16 %v1110, %v1109
      %v1123 = vpack.c.b16 %v1112, %v1111
      %v1124 = vpack.c.b16 %v1114, %v1113
      %v1125 = vpack.c.b16 %v1116, %v1115
      %v1126 = vpack.c.b16 %v1118, %v1117
      %v1127 = vpack.c.b16 %v1119, %v1119
      %vm1135 = vcmask 982016
      %v1137 = vsel %vm1135, %v1073, 0
      %v1140 = vsel %vm789, %v1127, 0
      %1142 = vmatprep.subr.bf16.mxu0 0
      %1143 = vmatpush1.bf16.msra.mxu0 %v1140
      %1144 = vmatprep.subr.bf16.mxu0 0
      %1145 = vmatpush1.bf16.msra.mxu0 %v1126
      %1146 = vmatprep.subr.bf16.mxu0 0
      %1147 = vmatpush1.bf16.msra.mxu0 %v1125
      %1148 = vmatprep.subr.bf16.mxu0 0
      %1149 = vmatpush1.bf16.msra.mxu0 %v1124
      %1150 = vmatprep.subr.bf16.mxu0 0
      %1151 = vmatpush1.bf16.msra.mxu0 %v1123
      %1152 = vmatprep.subr.bf16.mxu0 0
      %1153 = vmatpush1.bf16.msra.mxu0 %v1122
      %1154 = vmatprep.subr.bf16.mxu0 0
      %1155 = vmatpush1.bf16.msra.mxu0 %v1121
      %1156 = vmatprep.subr.bf16.mxu0 0
      %1157 = vmatpush1.bf16.msra.mxu0 %v1120
      %1158 = vmatprep.subr.bf16.mxu0 0
      %1159 = vmatpush2.bf16.msra.mxu0 0
      %1160 = vmatprep.subr.bf16.mxu0 0
      %1161 = vmatpush2.bf16.msra.mxu0 0
      %1162 = vmatprep.subr.bf16.mxu0 0
      %1163 = vmatpush2.bf16.msra.mxu0 0
      %1164 = vmatprep.subr.bf16.mxu0 0
      %1165 = vmatpush2.bf16.msra.mxu0 0
      %1166 = vmatprep.subr.bf16.mxu0 0
      %1167 = vmatpush2.bf16.msra.mxu0 0
      %1168 = vmatprep.subr.bf16.mxu0 0
      %1169 = vmatpush2.bf16.msra.mxu0 0
      %1170 = vmatprep.subr.bf16.mxu0 0
      %1171 = vmatpush2.bf16.msra.mxu0 0
      %1172 = vmatprep.subr.bf16.mxu0 0
      %1173 = vmatpush2.bf16.msra.mxu0 0
      %1174 = vmatprep.mubr.bf16.mxu0 0
      %1175 = vmatmul.mubr.bf16.gmra.mxu0 %v1137
      %v1176 = vpop.f32.mrf.mxu0
      %v1177 = vadd.f32 %v1089, %v1176
      %v1178 = vpop.f32.mrf.mxu0
      %v1179 = vpop.f32.mrf.mxu0
      %v1180 = vpop.f32.mrf.mxu0
      %1181 = vdwg.mxu0
      %v1182 = vmax.f32 %v1177, 0.0
      %v1183 = vpack.c.bf16 %v1182, %v1182
      %v1184 = vld [vmem:[%s9] sm:$0xf]
      %v1185 = vld [vmem:[%s9 + $0x4] sm:$0xf]
      %v1186 = vld [vmem:[%s9 + $0x8] sm:$0xf]
      %v1187 = vld [vmem:[%s9 + $0xc] sm:$0xf]
      %v1188 = vld [vmem:[%s9 + $0x10] sm:$0xf]
      %v1189 = vld [vmem:[%s9 + $0x14] sm:$0xf]
      %v1190 = vld [vmem:[%s9 + $0x18] sm:$0xf]
      %v1191 = vld [vmem:[%s9 + $0x1c] sm:$0xf]
      %v1192 = vld [vmem:[%s9 + $0x20] sm:$0xf]
      %v1193 = vld [vmem:[%s9 + $0x24] sm:$0xf]
      %v1194 = vld [vmem:[%s9 + $0x28] sm:$0x3]
      %v1195 = vld [vmem:[#allocation2] sm:$0x1]
      %v1207 = vunpack.c.l.b16 %v1184
      %v1208 = vunpack.c.l.b16 %v1185
      %v1209 = vunpack.c.l.b16 %v1186
      %v1210 = vunpack.c.l.b16 %v1187
      %v1211 = vunpack.c.l.b16 %v1188
      %v1212 = vunpack.c.l.b16 %v1189
      %v1213 = vunpack.c.l.b16 %v1190
      %v1214 = vunpack.c.l.b16 %v1191
      %v1215 = vunpack.c.l.b16 %v1192
      %v1216 = vunpack.c.l.b16 %v1193
      %v1217 = vunpack.c.l.b16 %v1194
      %v1218 = vpack.c.b16 %v1208, %v1207
      %v1219 = vpack.c.b16 %v1210, %v1209
      %v1220 = vpack.c.b16 %v1212, %v1211
      %v1221 = vpack.c.b16 %v1214, %v1213
      %v1222 = vpack.c.b16 %v1216, %v1215
      %v1223 = vpack.c.b16 %v1217, %v1217
      %vm1229 = vcmask 687104
      %v1231 = vsel %vm1229, %v1183, 0
      %v1234 = vsel %vm561, %v1223, 0
      %1236 = vmatprep.subr.bf16.mxu0 0
      %1237 = vmatpush1.bf16.msra.mxu0 0
      %1238 = vmatprep.subr.bf16.mxu0 0
      %1239 = vmatpush1.bf16.msra.mxu0 0
      %1240 = vmatprep.subr.bf16.mxu0 0
      %1241 = vmatpush1.bf16.msra.mxu0 %v1234
      %1242 = vmatprep.subr.bf16.mxu0 0
      %1243 = vmatpush1.bf16.msra.mxu0 %v1222
      %1244 = vmatprep.subr.bf16.mxu0 0
      %1245 = vmatpush1.bf16.msra.mxu0 %v1221
      %1246 = vmatprep.subr.bf16.mxu0 0
      %1247 = vmatpush1.bf16.msra.mxu0 %v1220
      %1248 = vmatprep.subr.bf16.mxu0 0
      %1249 = vmatpush1.bf16.msra.mxu0 %v1219
      %1250 = vmatprep.subr.bf16.mxu0 0
      %1251 = vmatpush1.bf16.msra.mxu0 %v1218
      %1252 = vmatprep.subr.bf16.mxu0 0
      %1253 = vmatpush2.bf16.msra.mxu0 0
      %1254 = vmatprep.subr.bf16.mxu0 0
      %1255 = vmatpush2.bf16.msra.mxu0 0
      %1256 = vmatprep.subr.bf16.mxu0 0
      %1257 = vmatpush2.bf16.msra.mxu0 0
      %1258 = vmatprep.subr.bf16.mxu0 0
      %1259 = vmatpush2.bf16.msra.mxu0 0
      %1260 = vmatprep.subr.bf16.mxu0 0
      %1261 = vmatpush2.bf16.msra.mxu0 0
      %1262 = vmatprep.subr.bf16.mxu0 0
      %1263 = vmatpush2.bf16.msra.mxu0 0
      %1264 = vmatprep.subr.bf16.mxu0 0
      %1265 = vmatpush2.bf16.msra.mxu0 0
      %1266 = vmatprep.subr.bf16.mxu0 0
      %1267 = vmatpush2.bf16.msra.mxu0 0
      %1268 = vmatprep.mubr.bf16.mxu0 0
      %1269 = vmatmul.mubr.bf16.gmra.mxu0 %v1231
      %v1270 = vpop.f32.mrf.mxu0
      %v1271 = vadd.f32 %v1195, %v1270
      %v1272 = vpop.f32.mrf.mxu0
      %v1273 = vpop.f32.mrf.mxu0
      %v1274 = vpop.f32.mrf.mxu0
      %1275 = vdwg.mxu0
      %vm1276 = vcmask 0
      %1277 = vst.msk [vmem:[%s384] sm:$0x1] %vm1276, %v1271
      %p1278 = scmp.lt.s32.totalorder %s24, 1
      %s1279 = scalar_select %p1278, %s24, 1
      %s1280 = scalar_lea.vmem %s11, %s1279
      // Predicated region
      $region65: #{net_forward.1} parent=63 // pred_check
        %p1281 = pneg %p278
      $region66: #{net_forward.1} parent=63 // pred_check_branch
        %1283 = sbr.rel (%p1281) target = $region68
      $region67: #{net_forward.1} parent=63 // pred_region
        _
      $region68: #{net_forward.1} parent=63 // pred_fallthru
        _
    $region64: #{net_forward.1} parent=5 // pred_fallthru
      _
    %p1284 = scmp.le.s32.totalorder 2, %s19
    // Predicated region
    $region69: #{net_forward.1} parent=5 // pred_check
      %p1285 = pneg %p1284
    $region70: #{net_forward.1} parent=5 // pred_check_branch
      %1287 = sbr.rel (%p1285) target = $region72
    $region71: #{net_forward.1} parent=5 // pred_region
      %s1288 = ssub.s32 %s19, 2
      // Predicated region
      $region73: #{net_forward.1} parent=71 // pred_check
        %p1289 = pneg %p284
      $region74: #{net_forward.1} parent=71 // pred_check_branch
        %1291 = sbr.rel (%p1289) target = $region76
      $region75: #{net_forward.1} parent=71 // pred_region
        %p1292 = scmp.lt.s32.totalorder %s25, 1
        %s1293 = scalar_select %p1292, %s25, 1
        %s1294 = scalar_lea.vmem %s11, %s1293
      $region76: #{net_forward.1} parent=71 // pred_fallthru
        _
    $region72: #{net_forward.1} parent=5 // pred_fallthru
      _
  $region6: #{net_forward.1} parent=0 // loop_footer
    %s23 = sadd.s32 1, %s19
  $region7: #{net_forward.1} parent=0 // loop_footer_branch
    %18 = sbr.rel target = $region3
  $region8: #{net_forward.1} parent=0 // loop_exit
    _

</llo_original>
